<compile_context>
chip_gen: v5e
topology: v5e:2x2
jax: 0.10.0
libtpu: 0.0.40
codegen_flags: <defaults>
</compile_context>

<pallas_src>
import jax
import jax.numpy as jnp
from jax.experimental import pallas as pl
from jax.experimental.pallas import tpu as pltpu

N_HIDDEN = 10
LANES = 128


def laplace_nn_kernel(params_ref, b_ref, xx_ref, yy_ref, o_ref):
    """Fused forward pass for one (TILE_ROWS, 128) batch tile.

    params_ref: SMEM (10, 5) f32 -> per-unit [a, phi, R, P, Q] (pre-folded)
    b_ref:      SMEM (1,)   f32  -> output Linear bias
    xx_ref:     VMEM (TILE_ROWS, 128) f32
    yy_ref:     VMEM (TILE_ROWS, 128) f32
    o_ref:      VMEM (TILE_ROWS, 128) f32
    """
    xx = xx_ref[...]
    yy = yy_ref[...]

    acc = jnp.full(xx.shape, b_ref[0], dtype=jnp.float32)

    # Static unroll over the 10 hidden units; scalars broadcast from SMEM.
    for i in range(N_HIDDEN):
        a = params_ref[i, 0]
        phi = params_ref[i, 1]
        R = params_ref[i, 2]    # w_i * sqrt(A^2 + B^2)
        P = params_ref[i, 3]    # (C + D) / 2
        Q = params_ref[i, 4]    # (C - D) / 2

        # A*cos(a*xx) + B*sin(a*xx) == sqrt(A^2+B^2) * cos(a*xx - phi)
        trig = R * jnp.cos(a * xx - phi)

        # C*cosh(a*yy) + D*sinh(a*yy) == P*e^{a*yy} + Q*e^{-a*yy}
        e_pos = jnp.exp(a * yy)
        e_neg = 1.0 / e_pos            # exact reciprocal; == exp(-a*yy) to ~1 ulp
        hyp = P * e_pos + Q * e_neg

        acc = acc + trig * hyp         # Linear(10,1) fused (w_i already in R)

    o_ref[...] = acc


def laplace_nn_forward(x, params, w, b, *, tile_rows=256):
    """x: (N, 2) f32, params: (10, 5) f32 [a,A,B,C,D], w: (10,) f32, b: (1,) f32 -> (N, 1) f32."""
    N = x.shape[0]
    x = jnp.asarray(x, jnp.float32)
    params = jnp.asarray(params, jnp.float32)
    w = jnp.asarray(w, jnp.float32)
    b = jnp.asarray(b, jnp.float32)

    # Host-side scalar folding (free): [a, phi, R, P, Q] per unit.
    a = params[:, 0]
    A = params[:, 1]
    B = params[:, 2]
    C = params[:, 3]
    D = params[:, 4]
    R = w * jnp.sqrt(A * A + B * B)
    phi = jnp.arctan2(B, A)
    P = 0.5 * (C + D)
    Q = 0.5 * (C - D)
    folded = jnp.stack([a, phi, R, P, Q], axis=1)  # (10, 5)

    # Batch layout: pad N up to full (rows, 128) slabs, tile rows over a grid.
    rows_needed = -(-N // LANES)
    if rows_needed <= tile_rows:
        tile_rows = -(-max(rows_needed, 1) // 8) * 8   # single tile, mult of 8 sublanes
    num_tiles = -(-rows_needed // tile_rows)
    padded_rows = num_tiles * tile_rows
    padded_n = padded_rows * LANES

    xx = jnp.pad(x[:, 0], (0, padded_n - N)).reshape(padded_rows, LANES)
    yy = jnp.pad(x[:, 1], (0, padded_n - N)).reshape(padded_rows, LANES)

    cost = pl.CostEstimate(
        flops=10 * N_HIDDEN * padded_n,
        transcendentals=2 * N_HIDDEN * padded_n,
        bytes_accessed=3 * 4 * padded_n,
    )

    out = pl.pallas_call(
        laplace_nn_kernel,
        out_shape=jax.ShapeDtypeStruct((padded_rows, LANES), jnp.float32),
        grid=(num_tiles,),
        in_specs=[
            pl.BlockSpec(memory_space=pltpu.MemorySpace.SMEM),      # folded params
            pl.BlockSpec(memory_space=pltpu.MemorySpace.SMEM),      # bias
            pl.BlockSpec((tile_rows, LANES), lambda i: (i, 0)),     # xx tile
            pl.BlockSpec((tile_rows, LANES), lambda i: (i, 0)),     # yy tile
        ],
        out_specs=pl.BlockSpec((tile_rows, LANES), lambda i: (i, 0)),
        compiler_params=pltpu.CompilerParams(
            dimension_semantics=("parallel",),
        ),
        cost_estimate=cost,
    )(folded, b, xx, yy)

    return out.reshape(padded_n)[:N].reshape(N, 1)


def laplace_nn_reference(x, params, w, b):
    """Pure-JAX reference matching the PyTorch forward exactly."""
    x = jnp.asarray(x, jnp.float32)
    xx = x[:, 0]
    yy = x[:, 1]
    outs = []
    for i in range(N_HIDDEN):
        a, A, B, C, D = params[i]
        h = (A * jnp.cos(a * xx) + B * jnp.sin(a * xx)) * (
            C * jnp.cosh(a * yy) + D * jnp.sinh(a * yy))
        outs.append(h)
    hidden = jnp.stack(outs, axis=1)  # (N, 10)
    return hidden @ w[:, None] + b    # (N, 1)


if __name__ == "__main__":
    key = jax.random.PRNGKey(0)
    k_x, k_p, k_w, k_b = jax.random.split(key, 4)

    N = 300  # small batch of (x, y) points; deliberately not a multiple of 128
    x = jax.random.normal(k_x, (N, 2), dtype=jnp.float32)

    # Deterministic "randn" parameter init mirroring the module's __init__:
    # 10 units x (a, A, B, C, D), Linear(10, 1) weight/bias ~ N(0, 1).
    params = jax.random.normal(k_p, (N_HIDDEN, 5), dtype=jnp.float32)
    w = jax.random.normal(k_w, (N_HIDDEN,), dtype=jnp.float32)
    b = jax.random.normal(k_b, (1,), dtype=jnp.float32)

    out = laplace_nn_forward(x, params, w, b)
    out = jax.block_until_ready(out)

    ref = laplace_nn_reference(x, params, w, b)
    assert out.shape == (N, 1), f"bad shape {out.shape}"
    assert jnp.allclose(out, ref, rtol=1e-4, atol=1e-4), "mismatch vs reference"

    print("KERNEL_OK")
</pallas_src>

<mosaic_0001>
module attributes {stable_mosaic.version = 11 : i64} {
  func.func @laplace_nn_kernel(%arg0: i32, %arg1: memref<10x5xf32, #tpu.memory_space<smem>>, %arg2: memref<1xf32, #tpu.memory_space<smem>>, %arg3: memref<8x128xf32, #tpu.memory_space<vmem>>, %arg4: memref<8x128xf32, #tpu.memory_space<vmem>>, %arg5: memref<8x128xf32, #tpu.memory_space<vmem>>) attributes {dimension_semantics = [#tpu.dimension_semantics<parallel>], iteration_bounds = array<i64: 1>, scalar_prefetch = 0 : i64, scratch_operands = 0 : i64, tpu.core_type = #tpu.core_type<tc>, window_params = [{transform_indices = @transform_0, window_bounds = array<i64: 10, 5>}, {transform_indices = @transform_1, window_bounds = array<i64: 1>}, {transform_indices = @transform_2, window_bounds = array<i64: 8, 128>}, {transform_indices = @transform_3, window_bounds = array<i64: 8, 128>}, {transform_indices = @transform_4, window_bounds = array<i64: 8, 128>}]} {
    %c0 = arith.constant 0 : index
    %c0_0 = arith.constant 0 : index
    %0 = vector.load %arg3[%c0, %c0_0] : memref<8x128xf32, #tpu.memory_space<vmem>>, vector<8x128xf32>
    %c0_1 = arith.constant 0 : index
    %c0_2 = arith.constant 0 : index
    %1 = vector.load %arg4[%c0_1, %c0_2] : memref<8x128xf32, #tpu.memory_space<vmem>>, vector<8x128xf32>
    %c0_3 = arith.constant 0 : index
    %2 = memref.load %arg2[%c0_3] : memref<1xf32, #tpu.memory_space<smem>>
    %3 = vector.broadcast %2 : f32 to vector<8x128xf32>
    %c0_4 = arith.constant 0 : index
    %c0_5 = arith.constant 0 : index
    %4 = memref.load %arg1[%c0_4, %c0_5] : memref<10x5xf32, #tpu.memory_space<smem>>
    %c0_6 = arith.constant 0 : index
    %c1 = arith.constant 1 : index
    %5 = memref.load %arg1[%c0_6, %c1] : memref<10x5xf32, #tpu.memory_space<smem>>
    %c0_7 = arith.constant 0 : index
    %c2 = arith.constant 2 : index
    %6 = memref.load %arg1[%c0_7, %c2] : memref<10x5xf32, #tpu.memory_space<smem>>
    %c0_8 = arith.constant 0 : index
    %c3 = arith.constant 3 : index
    %7 = memref.load %arg1[%c0_8, %c3] : memref<10x5xf32, #tpu.memory_space<smem>>
    %c0_9 = arith.constant 0 : index
    %c4 = arith.constant 4 : index
    %8 = memref.load %arg1[%c0_9, %c4] : memref<10x5xf32, #tpu.memory_space<smem>>
    %9 = vector.broadcast %4 : f32 to vector<8x128xf32>
    %10 = arith.mulf %9, %0 : vector<8x128xf32>
    %11 = vector.broadcast %5 : f32 to vector<8x128xf32>
    %12 = arith.subf %10, %11 : vector<8x128xf32>
    %13 = math.cos %12 : vector<8x128xf32>
    %14 = vector.broadcast %6 : f32 to vector<8x128xf32>
    %15 = arith.mulf %14, %13 : vector<8x128xf32>
    %16 = vector.broadcast %4 : f32 to vector<8x128xf32>
    %17 = arith.mulf %16, %1 : vector<8x128xf32>
    %18 = math.exp %17 : vector<8x128xf32>
    %cst = arith.constant 1.000000e+00 : f32
    %19 = vector.broadcast %cst : f32 to vector<8x128xf32>
    %20 = arith.divf %19, %18 : vector<8x128xf32>
    %21 = vector.broadcast %7 : f32 to vector<8x128xf32>
    %22 = arith.mulf %21, %18 : vector<8x128xf32>
    %23 = vector.broadcast %8 : f32 to vector<8x128xf32>
    %24 = arith.mulf %23, %20 : vector<8x128xf32>
    %25 = arith.addf %22, %24 : vector<8x128xf32>
    %26 = arith.mulf %15, %25 : vector<8x128xf32>
    %27 = arith.addf %3, %26 : vector<8x128xf32>
    %c1_10 = arith.constant 1 : index
    %c0_11 = arith.constant 0 : index
    %28 = memref.load %arg1[%c1_10, %c0_11] : memref<10x5xf32, #tpu.memory_space<smem>>
    %c1_12 = arith.constant 1 : index
    %c1_13 = arith.constant 1 : index
    %29 = memref.load %arg1[%c1_12, %c1_13] : memref<10x5xf32, #tpu.memory_space<smem>>
    %c1_14 = arith.constant 1 : index
    %c2_15 = arith.constant 2 : index
    %30 = memref.load %arg1[%c1_14, %c2_15] : memref<10x5xf32, #tpu.memory_space<smem>>
    %c1_16 = arith.constant 1 : index
    %c3_17 = arith.constant 3 : index
    %31 = memref.load %arg1[%c1_16, %c3_17] : memref<10x5xf32, #tpu.memory_space<smem>>
    %c1_18 = arith.constant 1 : index
    %c4_19 = arith.constant 4 : index
    %32 = memref.load %arg1[%c1_18, %c4_19] : memref<10x5xf32, #tpu.memory_space<smem>>
    %33 = vector.broadcast %28 : f32 to vector<8x128xf32>
    %34 = arith.mulf %33, %0 : vector<8x128xf32>
    %35 = vector.broadcast %29 : f32 to vector<8x128xf32>
    %36 = arith.subf %34, %35 : vector<8x128xf32>
    %37 = math.cos %36 : vector<8x128xf32>
    %38 = vector.broadcast %30 : f32 to vector<8x128xf32>
    %39 = arith.mulf %38, %37 : vector<8x128xf32>
    %40 = vector.broadcast %28 : f32 to vector<8x128xf32>
    %41 = arith.mulf %40, %1 : vector<8x128xf32>
    %42 = math.exp %41 : vector<8x128xf32>
    %cst_20 = arith.constant 1.000000e+00 : f32
    %43 = vector.broadcast %cst_20 : f32 to vector<8x128xf32>
    %44 = arith.divf %43, %42 : vector<8x128xf32>
    %45 = vector.broadcast %31 : f32 to vector<8x128xf32>
    %46 = arith.mulf %45, %42 : vector<8x128xf32>
    %47 = vector.broadcast %32 : f32 to vector<8x128xf32>
    %48 = arith.mulf %47, %44 : vector<8x128xf32>
    %49 = arith.addf %46, %48 : vector<8x128xf32>
    %50 = arith.mulf %39, %49 : vector<8x128xf32>
    %51 = arith.addf %27, %50 : vector<8x128xf32>
    %c2_21 = arith.constant 2 : index
    %c0_22 = arith.constant 0 : index
    %52 = memref.load %arg1[%c2_21, %c0_22] : memref<10x5xf32, #tpu.memory_space<smem>>
    %c2_23 = arith.constant 2 : index
    %c1_24 = arith.constant 1 : index
    %53 = memref.load %arg1[%c2_23, %c1_24] : memref<10x5xf32, #tpu.memory_space<smem>>
    %c2_25 = arith.constant 2 : index
    %c2_26 = arith.constant 2 : index
    %54 = memref.load %arg1[%c2_25, %c2_26] : memref<10x5xf32, #tpu.memory_space<smem>>
    %c2_27 = arith.constant 2 : index
    %c3_28 = arith.constant 3 : index
    %55 = memref.load %arg1[%c2_27, %c3_28] : memref<10x5xf32, #tpu.memory_space<smem>>
    %c2_29 = arith.constant 2 : index
    %c4_30 = arith.constant 4 : index
    %56 = memref.load %arg1[%c2_29, %c4_30] : memref<10x5xf32, #tpu.memory_space<smem>>
    %57 = vector.broadcast %52 : f32 to vector<8x128xf32>
    %58 = arith.mulf %57, %0 : vector<8x128xf32>
    %59 = vector.broadcast %53 : f32 to vector<8x128xf32>
    %60 = arith.subf %58, %59 : vector<8x128xf32>
    %61 = math.cos %60 : vector<8x128xf32>
    %62 = vector.broadcast %54 : f32 to vector<8x128xf32>
    %63 = arith.mulf %62, %61 : vector<8x128xf32>
    %64 = vector.broadcast %52 : f32 to vector<8x128xf32>
    %65 = arith.mulf %64, %1 : vector<8x128xf32>
    %66 = math.exp %65 : vector<8x128xf32>
    %cst_31 = arith.constant 1.000000e+00 : f32
    %67 = vector.broadcast %cst_31 : f32 to vector<8x128xf32>
    %68 = arith.divf %67, %66 : vector<8x128xf32>
    %69 = vector.broadcast %55 : f32 to vector<8x128xf32>
    %70 = arith.mulf %69, %66 : vector<8x128xf32>
    %71 = vector.broadcast %56 : f32 to vector<8x128xf32>
    %72 = arith.mulf %71, %68 : vector<8x128xf32>
    %73 = arith.addf %70, %72 : vector<8x128xf32>
    %74 = arith.mulf %63, %73 : vector<8x128xf32>
    %75 = arith.addf %51, %74 : vector<8x128xf32>
    %c3_32 = arith.constant 3 : index
    %c0_33 = arith.constant 0 : index
    %76 = memref.load %arg1[%c3_32, %c0_33] : memref<10x5xf32, #tpu.memory_space<smem>>
    %c3_34 = arith.constant 3 : index
    %c1_35 = arith.constant 1 : index
    %77 = memref.load %arg1[%c3_34, %c1_35] : memref<10x5xf32, #tpu.memory_space<smem>>
    %c3_36 = arith.constant 3 : index
    %c2_37 = arith.constant 2 : index
    %78 = memref.load %arg1[%c3_36, %c2_37] : memref<10x5xf32, #tpu.memory_space<smem>>
    %c3_38 = arith.constant 3 : index
    %c3_39 = arith.constant 3 : index
    %79 = memref.load %arg1[%c3_38, %c3_39] : memref<10x5xf32, #tpu.memory_space<smem>>
    %c3_40 = arith.constant 3 : index
    %c4_41 = arith.constant 4 : index
    %80 = memref.load %arg1[%c3_40, %c4_41] : memref<10x5xf32, #tpu.memory_space<smem>>
    %81 = vector.broadcast %76 : f32 to vector<8x128xf32>
    %82 = arith.mulf %81, %0 : vector<8x128xf32>
    %83 = vector.broadcast %77 : f32 to vector<8x128xf32>
    %84 = arith.subf %82, %83 : vector<8x128xf32>
    %85 = math.cos %84 : vector<8x128xf32>
    %86 = vector.broadcast %78 : f32 to vector<8x128xf32>
    %87 = arith.mulf %86, %85 : vector<8x128xf32>
    %88 = vector.broadcast %76 : f32 to vector<8x128xf32>
    %89 = arith.mulf %88, %1 : vector<8x128xf32>
    %90 = math.exp %89 : vector<8x128xf32>
    %cst_42 = arith.constant 1.000000e+00 : f32
    %91 = vector.broadcast %cst_42 : f32 to vector<8x128xf32>
    %92 = arith.divf %91, %90 : vector<8x128xf32>
    %93 = vector.broadcast %79 : f32 to vector<8x128xf32>
    %94 = arith.mulf %93, %90 : vector<8x128xf32>
    %95 = vector.broadcast %80 : f32 to vector<8x128xf32>
    %96 = arith.mulf %95, %92 : vector<8x128xf32>
    %97 = arith.addf %94, %96 : vector<8x128xf32>
    %98 = arith.mulf %87, %97 : vector<8x128xf32>
    %99 = arith.addf %75, %98 : vector<8x128xf32>
    %c4_43 = arith.constant 4 : index
    %c0_44 = arith.constant 0 : index
    %100 = memref.load %arg1[%c4_43, %c0_44] : memref<10x5xf32, #tpu.memory_space<smem>>
    %c4_45 = arith.constant 4 : index
    %c1_46 = arith.constant 1 : index
    %101 = memref.load %arg1[%c4_45, %c1_46] : memref<10x5xf32, #tpu.memory_space<smem>>
    %c4_47 = arith.constant 4 : index
    %c2_48 = arith.constant 2 : index
    %102 = memref.load %arg1[%c4_47, %c2_48] : memref<10x5xf32, #tpu.memory_space<smem>>
    %c4_49 = arith.constant 4 : index
    %c3_50 = arith.constant 3 : index
    %103 = memref.load %arg1[%c4_49, %c3_50] : memref<10x5xf32, #tpu.memory_space<smem>>
    %c4_51 = arith.constant 4 : index
    %c4_52 = arith.constant 4 : index
    %104 = memref.load %arg1[%c4_51, %c4_52] : memref<10x5xf32, #tpu.memory_space<smem>>
    %105 = vector.broadcast %100 : f32 to vector<8x128xf32>
    %106 = arith.mulf %105, %0 : vector<8x128xf32>
    %107 = vector.broadcast %101 : f32 to vector<8x128xf32>
    %108 = arith.subf %106, %107 : vector<8x128xf32>
    %109 = math.cos %108 : vector<8x128xf32>
    %110 = vector.broadcast %102 : f32 to vector<8x128xf32>
    %111 = arith.mulf %110, %109 : vector<8x128xf32>
    %112 = vector.broadcast %100 : f32 to vector<8x128xf32>
    %113 = arith.mulf %112, %1 : vector<8x128xf32>
    %114 = math.exp %113 : vector<8x128xf32>
    %cst_53 = arith.constant 1.000000e+00 : f32
    %115 = vector.broadcast %cst_53 : f32 to vector<8x128xf32>
    %116 = arith.divf %115, %114 : vector<8x128xf32>
    %117 = vector.broadcast %103 : f32 to vector<8x128xf32>
    %118 = arith.mulf %117, %114 : vector<8x128xf32>
    %119 = vector.broadcast %104 : f32 to vector<8x128xf32>
    %120 = arith.mulf %119, %116 : vector<8x128xf32>
    %121 = arith.addf %118, %120 : vector<8x128xf32>
    %122 = arith.mulf %111, %121 : vector<8x128xf32>
    %123 = arith.addf %99, %122 : vector<8x128xf32>
    %c5 = arith.constant 5 : index
    %c0_54 = arith.constant 0 : index
    %124 = memref.load %arg1[%c5, %c0_54] : memref<10x5xf32, #tpu.memory_space<smem>>
    %c5_55 = arith.constant 5 : index
    %c1_56 = arith.constant 1 : index
    %125 = memref.load %arg1[%c5_55, %c1_56] : memref<10x5xf32, #tpu.memory_space<smem>>
    %c5_57 = arith.constant 5 : index
    %c2_58 = arith.constant 2 : index
    %126 = memref.load %arg1[%c5_57, %c2_58] : memref<10x5xf32, #tpu.memory_space<smem>>
    %c5_59 = arith.constant 5 : index
    %c3_60 = arith.constant 3 : index
    %127 = memref.load %arg1[%c5_59, %c3_60] : memref<10x5xf32, #tpu.memory_space<smem>>
    %c5_61 = arith.constant 5 : index
    %c4_62 = arith.constant 4 : index
    %128 = memref.load %arg1[%c5_61, %c4_62] : memref<10x5xf32, #tpu.memory_space<smem>>
    %129 = vector.broadcast %124 : f32 to vector<8x128xf32>
    %130 = arith.mulf %129, %0 : vector<8x128xf32>
    %131 = vector.broadcast %125 : f32 to vector<8x128xf32>
    %132 = arith.subf %130, %131 : vector<8x128xf32>
    %133 = math.cos %132 : vector<8x128xf32>
    %134 = vector.broadcast %126 : f32 to vector<8x128xf32>
    %135 = arith.mulf %134, %133 : vector<8x128xf32>
    %136 = vector.broadcast %124 : f32 to vector<8x128xf32>
    %137 = arith.mulf %136, %1 : vector<8x128xf32>
    %138 = math.exp %137 : vector<8x128xf32>
    %cst_63 = arith.constant 1.000000e+00 : f32
    %139 = vector.broadcast %cst_63 : f32 to vector<8x128xf32>
    %140 = arith.divf %139, %138 : vector<8x128xf32>
    %141 = vector.broadcast %127 : f32 to vector<8x128xf32>
    %142 = arith.mulf %141, %138 : vector<8x128xf32>
    %143 = vector.broadcast %128 : f32 to vector<8x128xf32>
    %144 = arith.mulf %143, %140 : vector<8x128xf32>
    %145 = arith.addf %142, %144 : vector<8x128xf32>
    %146 = arith.mulf %135, %145 : vector<8x128xf32>
    %147 = arith.addf %123, %146 : vector<8x128xf32>
    %c6 = arith.constant 6 : index
    %c0_64 = arith.constant 0 : index
    %148 = memref.load %arg1[%c6, %c0_64] : memref<10x5xf32, #tpu.memory_space<smem>>
    %c6_65 = arith.constant 6 : index
    %c1_66 = arith.constant 1 : index
    %149 = memref.load %arg1[%c6_65, %c1_66] : memref<10x5xf32, #tpu.memory_space<smem>>
    %c6_67 = arith.constant 6 : index
    %c2_68 = arith.constant 2 : index
    %150 = memref.load %arg1[%c6_67, %c2_68] : memref<10x5xf32, #tpu.memory_space<smem>>
    %c6_69 = arith.constant 6 : index
    %c3_70 = arith.constant 3 : index
    %151 = memref.load %arg1[%c6_69, %c3_70] : memref<10x5xf32, #tpu.memory_space<smem>>
    %c6_71 = arith.constant 6 : index
    %c4_72 = arith.constant 4 : index
    %152 = memref.load %arg1[%c6_71, %c4_72] : memref<10x5xf32, #tpu.memory_space<smem>>
    %153 = vector.broadcast %148 : f32 to vector<8x128xf32>
    %154 = arith.mulf %153, %0 : vector<8x128xf32>
    %155 = vector.broadcast %149 : f32 to vector<8x128xf32>
    %156 = arith.subf %154, %155 : vector<8x128xf32>
    %157 = math.cos %156 : vector<8x128xf32>
    %158 = vector.broadcast %150 : f32 to vector<8x128xf32>
    %159 = arith.mulf %158, %157 : vector<8x128xf32>
    %160 = vector.broadcast %148 : f32 to vector<8x128xf32>
    %161 = arith.mulf %160, %1 : vector<8x128xf32>
    %162 = math.exp %161 : vector<8x128xf32>
    %cst_73 = arith.constant 1.000000e+00 : f32
    %163 = vector.broadcast %cst_73 : f32 to vector<8x128xf32>
    %164 = arith.divf %163, %162 : vector<8x128xf32>
    %165 = vector.broadcast %151 : f32 to vector<8x128xf32>
    %166 = arith.mulf %165, %162 : vector<8x128xf32>
    %167 = vector.broadcast %152 : f32 to vector<8x128xf32>
    %168 = arith.mulf %167, %164 : vector<8x128xf32>
    %169 = arith.addf %166, %168 : vector<8x128xf32>
    %170 = arith.mulf %159, %169 : vector<8x128xf32>
    %171 = arith.addf %147, %170 : vector<8x128xf32>
    %c7 = arith.constant 7 : index
    %c0_74 = arith.constant 0 : index
    %172 = memref.load %arg1[%c7, %c0_74] : memref<10x5xf32, #tpu.memory_space<smem>>
    %c7_75 = arith.constant 7 : index
    %c1_76 = arith.constant 1 : index
    %173 = memref.load %arg1[%c7_75, %c1_76] : memref<10x5xf32, #tpu.memory_space<smem>>
    %c7_77 = arith.constant 7 : index
    %c2_78 = arith.constant 2 : index
    %174 = memref.load %arg1[%c7_77, %c2_78] : memref<10x5xf32, #tpu.memory_space<smem>>
    %c7_79 = arith.constant 7 : index
    %c3_80 = arith.constant 3 : index
    %175 = memref.load %arg1[%c7_79, %c3_80] : memref<10x5xf32, #tpu.memory_space<smem>>
    %c7_81 = arith.constant 7 : index
    %c4_82 = arith.constant 4 : index
    %176 = memref.load %arg1[%c7_81, %c4_82] : memref<10x5xf32, #tpu.memory_space<smem>>
    %177 = vector.broadcast %172 : f32 to vector<8x128xf32>
    %178 = arith.mulf %177, %0 : vector<8x128xf32>
    %179 = vector.broadcast %173 : f32 to vector<8x128xf32>
    %180 = arith.subf %178, %179 : vector<8x128xf32>
    %181 = math.cos %180 : vector<8x128xf32>
    %182 = vector.broadcast %174 : f32 to vector<8x128xf32>
    %183 = arith.mulf %182, %181 : vector<8x128xf32>
    %184 = vector.broadcast %172 : f32 to vector<8x128xf32>
    %185 = arith.mulf %184, %1 : vector<8x128xf32>
    %186 = math.exp %185 : vector<8x128xf32>
    %cst_83 = arith.constant 1.000000e+00 : f32
    %187 = vector.broadcast %cst_83 : f32 to vector<8x128xf32>
    %188 = arith.divf %187, %186 : vector<8x128xf32>
    %189 = vector.broadcast %175 : f32 to vector<8x128xf32>
    %190 = arith.mulf %189, %186 : vector<8x128xf32>
    %191 = vector.broadcast %176 : f32 to vector<8x128xf32>
    %192 = arith.mulf %191, %188 : vector<8x128xf32>
    %193 = arith.addf %190, %192 : vector<8x128xf32>
    %194 = arith.mulf %183, %193 : vector<8x128xf32>
    %195 = arith.addf %171, %194 : vector<8x128xf32>
    %c8 = arith.constant 8 : index
    %c0_84 = arith.constant 0 : index
    %196 = memref.load %arg1[%c8, %c0_84] : memref<10x5xf32, #tpu.memory_space<smem>>
    %c8_85 = arith.constant 8 : index
    %c1_86 = arith.constant 1 : index
    %197 = memref.load %arg1[%c8_85, %c1_86] : memref<10x5xf32, #tpu.memory_space<smem>>
    %c8_87 = arith.constant 8 : index
    %c2_88 = arith.constant 2 : index
    %198 = memref.load %arg1[%c8_87, %c2_88] : memref<10x5xf32, #tpu.memory_space<smem>>
    %c8_89 = arith.constant 8 : index
    %c3_90 = arith.constant 3 : index
    %199 = memref.load %arg1[%c8_89, %c3_90] : memref<10x5xf32, #tpu.memory_space<smem>>
    %c8_91 = arith.constant 8 : index
    %c4_92 = arith.constant 4 : index
    %200 = memref.load %arg1[%c8_91, %c4_92] : memref<10x5xf32, #tpu.memory_space<smem>>
    %201 = vector.broadcast %196 : f32 to vector<8x128xf32>
    %202 = arith.mulf %201, %0 : vector<8x128xf32>
    %203 = vector.broadcast %197 : f32 to vector<8x128xf32>
    %204 = arith.subf %202, %203 : vector<8x128xf32>
    %205 = math.cos %204 : vector<8x128xf32>
    %206 = vector.broadcast %198 : f32 to vector<8x128xf32>
    %207 = arith.mulf %206, %205 : vector<8x128xf32>
    %208 = vector.broadcast %196 : f32 to vector<8x128xf32>
    %209 = arith.mulf %208, %1 : vector<8x128xf32>
    %210 = math.exp %209 : vector<8x128xf32>
    %cst_93 = arith.constant 1.000000e+00 : f32
    %211 = vector.broadcast %cst_93 : f32 to vector<8x128xf32>
    %212 = arith.divf %211, %210 : vector<8x128xf32>
    %213 = vector.broadcast %199 : f32 to vector<8x128xf32>
    %214 = arith.mulf %213, %210 : vector<8x128xf32>
    %215 = vector.broadcast %200 : f32 to vector<8x128xf32>
    %216 = arith.mulf %215, %212 : vector<8x128xf32>
    %217 = arith.addf %214, %216 : vector<8x128xf32>
    %218 = arith.mulf %207, %217 : vector<8x128xf32>
    %219 = arith.addf %195, %218 : vector<8x128xf32>
    %c9 = arith.constant 9 : index
    %c0_94 = arith.constant 0 : index
    %220 = memref.load %arg1[%c9, %c0_94] : memref<10x5xf32, #tpu.memory_space<smem>>
    %c9_95 = arith.constant 9 : index
    %c1_96 = arith.constant 1 : index
    %221 = memref.load %arg1[%c9_95, %c1_96] : memref<10x5xf32, #tpu.memory_space<smem>>
    %c9_97 = arith.constant 9 : index
    %c2_98 = arith.constant 2 : index
    %222 = memref.load %arg1[%c9_97, %c2_98] : memref<10x5xf32, #tpu.memory_space<smem>>
    %c9_99 = arith.constant 9 : index
    %c3_100 = arith.constant 3 : index
    %223 = memref.load %arg1[%c9_99, %c3_100] : memref<10x5xf32, #tpu.memory_space<smem>>
    %c9_101 = arith.constant 9 : index
    %c4_102 = arith.constant 4 : index
    %224 = memref.load %arg1[%c9_101, %c4_102] : memref<10x5xf32, #tpu.memory_space<smem>>
    %225 = vector.broadcast %220 : f32 to vector<8x128xf32>
    %226 = arith.mulf %225, %0 : vector<8x128xf32>
    %227 = vector.broadcast %221 : f32 to vector<8x128xf32>
    %228 = arith.subf %226, %227 : vector<8x128xf32>
    %229 = math.cos %228 : vector<8x128xf32>
    %230 = vector.broadcast %222 : f32 to vector<8x128xf32>
    %231 = arith.mulf %230, %229 : vector<8x128xf32>
    %232 = vector.broadcast %220 : f32 to vector<8x128xf32>
    %233 = arith.mulf %232, %1 : vector<8x128xf32>
    %234 = math.exp %233 : vector<8x128xf32>
    %cst_103 = arith.constant 1.000000e+00 : f32
    %235 = vector.broadcast %cst_103 : f32 to vector<8x128xf32>
    %236 = arith.divf %235, %234 : vector<8x128xf32>
    %237 = vector.broadcast %223 : f32 to vector<8x128xf32>
    %238 = arith.mulf %237, %234 : vector<8x128xf32>
    %239 = vector.broadcast %224 : f32 to vector<8x128xf32>
    %240 = arith.mulf %239, %236 : vector<8x128xf32>
    %241 = arith.addf %238, %240 : vector<8x128xf32>
    %242 = arith.mulf %231, %241 : vector<8x128xf32>
    %243 = arith.addf %219, %242 : vector<8x128xf32>
    %c0_104 = arith.constant 0 : index
    %c0_105 = arith.constant 0 : index
    %244 = vector.load %arg5[%c0_104, %c0_105] : memref<8x128xf32, #tpu.memory_space<vmem>>, vector<8x128xf32>
    tpu.vector_store %arg5[%c0_104, %c0_105], %243 {strides = array<i32>} : memref<8x128xf32, #tpu.memory_space<vmem>>, vector<8x128xf32>,
    return
  }
  func.func @transform_0(%arg0: i32) -> (i32, i32) {
    %c0_i32 = arith.constant 0 : i32
    %c0_i32_0 = arith.constant 0 : i32
    %c0_i32_1 = arith.constant 0 : i32
    return %c0_i32, %c0_i32_0 : i32, i32
  }
  func.func @transform_1(%arg0: i32) -> i32 {
    %c0_i32 = arith.constant 0 : i32
    %c0_i32_0 = arith.constant 0 : i32
    return %c0_i32 : i32
  }
  func.func @transform_2(%arg0: i32) -> (i32, i32) {
    %c0_i32 = arith.constant 0 : i32
    %c0_i32_0 = arith.constant 0 : i32
    return %arg0, %c0_i32 : i32, i32
  }
  func.func @transform_3(%arg0: i32) -> (i32, i32) {
    %c0_i32 = arith.constant 0 : i32
    %c0_i32_0 = arith.constant 0 : i32
    return %arg0, %c0_i32 : i32, i32
  }
  func.func @transform_4(%arg0: i32) -> (i32, i32) {
    %c0_i32 = arith.constant 0 : i32
    %c0_i32_0 = arith.constant 0 : i32
    return %arg0, %c0_i32 : i32, i32
  }
}

</mosaic_0001>

<llo_original>
// kernel: tpu_custom_call.1
$region0: #{tpu_custom_call.1}
  #allocation0 [shape = 'u32[]', space=smem, size = 0x4, offset = 0x4, fixed_abs, tag = 'smem constant byte address 0x4 - core index']
  #allocation1 [shape = 'u32[72,128]{1,0:T(1,128)}', space=vmem, size = 0x9000, scoped, tag = 'internal scratch']
  #allocation2 [shape = 'f32[1]{0:T(128)S(6)}', space=smem, size = 0x200, scoped, tag = 'scoped memory for tpu_custom_call.1']
  %s0 = inlined_call_operand.vmem [shape: f32[10,5], index: 0, kind: input, shape index: {}]
  %s1 = inlined_call_operand.<no memory space> [shape: f32[1], index: 1, kind: input, shape index: {}]
  %s2 = inlined_call_operand.vmem [shape: f32[8,128], index: 2, kind: input, shape index: {}]
  %s3 = inlined_call_operand.vmem [shape: f32[8,128], index: 3, kind: input, shape index: {}]
  %s4 = inlined_call_operand.hbm [shape: f32[8,128], index: 4, kind: output, shape index: {}]
  %s5 = sld [smem:[#allocation0]]
  $region30: #{tpu_custom_call.1} parent=0
    _
  %s7 = ssub.s32 1, %s5
  %s8 = scalar_select 0, %s7, %s5
  %9 = sst [smem:[#allocation2]] %s1
  $region1: #{tpu_custom_call.1} parent=0
    #allocation3 [shape = 'u8[8192]{0}', space=smem, size = 0x2000, scoped, tag = 'input window, operand 0, single buffered']
    #allocation4 [shape = 's32[1]{0}', space=sflag, size = 0x4, scoped, tag = 'scoped memory for tpu_custom_call.1']
    #allocation5 [shape = 's32[1]{0}', space=sflag, size = 0x4, scoped, tag = 'scoped memory for tpu_custom_call.1']
    #allocation6 [shape = 'u8[4096]{0}', space=vmem, size = 0x1000, scoped, tag = 'output window, operand 0, single buffered']
    %10 = vsyncpa [#allocation5], 0
    %11 = vsyncpa [#allocation4], 0
    // Predicated region
    $region2: #{tpu_custom_call.1} parent=1 // pred_check
      _
    $region3: #{tpu_custom_call.1} parent=1 // pred_check_branch
      %13 = sbr.rel (0) target = $region5
    $region4: #{tpu_custom_call.1} parent=1 // pred_region
      %15 = vsyncadd [#allocation5], 0
      %s16 = sshll.u32 %s0, 4
      %s17 = int_to_ptr.vmem [resolvable:$true] %s16
      %22 = dma.vmem_to_smem %s17, 256, [#allocation3], [#allocation5], 128, 128, 8
    $region5: #{tpu_custom_call.1} parent=1 // pred_fallthru
      _
    // Predicated region
    $region6: #{tpu_custom_call.1} parent=1 // pred_check
      _
    $region7: #{tpu_custom_call.1} parent=1 // pred_check_branch
      %24 = sbr.rel (0) target = $region9
    $region8: #{tpu_custom_call.1} parent=1 // pred_region
      _
    $region9: #{tpu_custom_call.1} parent=1 // pred_fallthru
      _
    // Predicated region
    $region10: #{tpu_custom_call.1} parent=1 // pred_check
      _
    $region11: #{tpu_custom_call.1} parent=1 // pred_check_branch
      %26 = sbr.rel (0) target = $region13
    $region12: #{tpu_custom_call.1} parent=1 // pred_region
      _
    $region13: #{tpu_custom_call.1} parent=1 // pred_fallthru
      _
    // Predicated region
    $region14: #{tpu_custom_call.1} parent=1 // pred_check
      _
    $region15: #{tpu_custom_call.1} parent=1 // pred_check_branch
      %28 = sbr.rel (0) target = $region17
    $region16: #{tpu_custom_call.1} parent=1 // pred_region
      _
    $region17: #{tpu_custom_call.1} parent=1 // pred_fallthru
      _
    // Predicated region
    $region18: #{tpu_custom_call.1} parent=1 // pred_check
      _
    $region19: #{tpu_custom_call.1} parent=1 // pred_check_branch
      %30 = sbr.rel (0) target = $region21
    $region20: #{tpu_custom_call.1} parent=1 // pred_region
      %32 = dma.done [#allocation5], 256
    $region21: #{tpu_custom_call.1} parent=1 // pred_fallthru
      _
    %33 = sfence
    %v34 = vld [vmem:[%s2] sm:$0xff]
    %v35 = vld [vmem:[%s3] sm:$0xff]
    %s36 = sld [smem:[#allocation2]]
    %v37 = vstv %s36
    %s38 = sld [smem:[#allocation3]]
    %s39 = sld [smem:[#allocation3 + $0x1]]
    %s40 = sld [smem:[#allocation3 + $0x2]]
    %s41 = sld [smem:[#allocation3 + $0x3]]
    %s42 = sld [smem:[#allocation3 + $0x4]]
    %v43 = vstv %s38
    %v44 = vmul.f32 %v43, %v34
    %v45 = vstv %s39
    %v46 = vsub.f32 %v44, %v45
    %v47 = vand.u32 2147483647, %v46
    %vm48 = vcmp.le.f32.partialorder %v47, 0.7853982
    %vm49 = vcmp.lt.s32.totalorder %v46, 0
    %v50 = vand.u32 %v46, 2139095040
    %v51 = vshrl.u32 %v50, 23
    %v52 = vsub.s32 %v51, 127
    %v53 = vand.u32 2147483647, %v46
    %v54 = vand.u32 %v53, 8388607
    %v55 = vor.u32 %v54, 8388608
    %v56 = vsub.s32 0, %v55
    %v57 = vadd.s32 %v52, 1
    %vm58 = vcmp.gt.s32.totalorder %v57, 0
    %v59 = vsel %vm58, %v57, 0
    %v60 = vshrl.u32 %v59, 5
    %v61 = vand.u32 %v59, 31
    %v62 = vsub.s32 32, %v61
    %v63 = vshrl.u32 683565275, %v62
    %v64 = vshll.u32 683565275, %v61
    %v65 = vshrl.u32 2475754826, %v62
    %v66 = vor.u32 %v64, %v65
    %v67 = vshll.u32 2475754826, %v61
    %v68 = vshrl.u32 2131351028, %v62
    %v69 = vor.u32 %v67, %v68
    %v70 = vshll.u32 2131351028, %v61
    %v71 = vshrl.u32 2102212464, %v62
    %v72 = vor.u32 %v70, %v71
    %v73 = vshll.u32 2102212464, %v61
    %v74 = vshrl.u32 920167782, %v62
    %v75 = vor.u32 %v73, %v74
    %v76 = vshll.u32 920167782, %v61
    %v77 = vshrl.u32 1326507024, %v62
    %v78 = vor.u32 %v76, %v77
    %vm79 = vcmp.lt.s32.totalorder %v60, 1
    %vm80 = vcmp.lt.s32.totalorder %v60, 2
    %vm81 = vcmp.lt.s32.totalorder %v60, 3
    %vm82 = vcmp.lt.s32.totalorder %v60, 4
    %v83 = vsel %vm79, %v63, %v66
    %v84 = vsel %vm82, %v72, 2102212464
    %v85 = vsel %vm81, %v69, %v84
    %v86 = vsel %vm80, %v83, %v85
    %v87 = vsel %vm79, %v66, %v69
    %v88 = vsel %vm82, %v75, 920167782
    %v89 = vsel %vm81, %v72, %v88
    %v90 = vsel %vm80, %v87, %v89
    %v91 = vsel %vm79, %v69, %v72
    %v92 = vsel %vm82, %v78, 1326507024
    %v93 = vsel %vm81, %v75, %v92
    %v94 = vsel %vm80, %v91, %v93
    %v95 = vshll.u32 %v55, 8
    %v96 = vand.u32 %v95, 65535
    %v97 = vshrl.u32 %v95, 16
    %v98 = vand.u32 %v94, 65535
    %v99 = vshrl.u32 %v94, 16
    %v100 = vmul.u32 %v96, %v98
    %v101 = vmul.u32 %v96, %v99
    %v102 = vmul.u32 %v97, %v98
    %v103 = vmul.u32 %v97, %v99
    %v104 = vshll.u32 %v101, 16
    %v105 = vshrl.u32 %v101, 16
    %v106 = vshll.u32 %v102, 16
    %v107 = vshrl.u32 %v102, 16
    %vm108 = vc.u32 %v100, %v104
    %v109 = vsel %vm108, 1, 0
    %v110 = vadd.s32 %v100, %v104
    %v111 = vadd.s32 %v103, %v109
    %vm112 = vc.u32 %v110, %v106
    %v113 = vsel %vm112, 1, 0
    %v114 = vadd.s32 %v110, %v106
    %v115 = vadd.s32 %v111, %v113
    %v116 = vadd.s32 %v115, %v105
    %v117 = vadd.s32 %v116, %v107
    %v118 = vand.u32 %v95, 65535
    %v119 = vshrl.u32 %v95, 16
    %v120 = vand.u32 %v90, 65535
    %v121 = vshrl.u32 %v90, 16
    %v122 = vmul.u32 %v118, %v120
    %v123 = vmul.u32 %v118, %v121
    %v124 = vmul.u32 %v119, %v120
    %v125 = vmul.u32 %v119, %v121
    %v126 = vshll.u32 %v123, 16
    %v127 = vshrl.u32 %v123, 16
    %v128 = vshll.u32 %v124, 16
    %v129 = vshrl.u32 %v124, 16
    %vm130 = vc.u32 %v122, %v126
    %v131 = vsel %vm130, 1, 0
    %v132 = vadd.s32 %v122, %v126
    %v133 = vadd.s32 %v125, %v131
    %vm134 = vc.u32 %v132, %v128
    %v135 = vsel %vm134, 1, 0
    %v136 = vadd.s32 %v132, %v128
    %v137 = vadd.s32 %v133, %v135
    %v138 = vadd.s32 %v137, %v127
    %v139 = vadd.s32 %v138, %v129
    %v140 = vmul.u32 %v95, %v86
    %v141 = vadd.s32 %v117, %v136
    %vm142 = vc.u32 %v117, %v136
    %v143 = vadd.s32 %v139, 1
    %v144 = vsel %vm142, %v143, %v139
    %v145 = vadd.s32 %v140, %v144
    %v146 = vadd.s32 %v145, 536870912
    %v147 = vshrl.u32 %v146, 30
    %v148 = vshll.u32 %v147, 30
    %v149 = vsub.s32 %v145, %v148
    %vm150 = vcmp.lt.s32.totalorder %v149, 0
    %v151 = vsub.s32 0, %v149
    %v152 = vsel %vm150, %v151, %v149
    %v153 = vclz %v152
    %v154 = vsub.s32 %v153, 2
    %vm155 = vcmp.gt.s32.totalorder 0, %v154
    %v156 = vsel %vm155, 0, %v154
    %v157 = vsub.s32 32, %v156
    %v158 = vshll.u32 %v149, %v156
    %v159 = vshrl.u32 %v141, %v157
    %v160 = vor.u32 %v158, %v159
    %v161 = vsub.s32 4294967266, %v156
    %v162 = vadd.s32 %v161, 127
    %v163 = vshll.u32 %v162, 23
    %v164 = vor.u32 4788187, %v163
    %v165 = vand.u32 2147483647, %v164
    %v167 = vcvt.s32.f32 %v160
    %v168 = vmul.f32 %v167, %v165
    %v169 = vxor.u32 %v168, 2147483648
    %v170 = vsel %vm49, %v169, %v168
    %v171 = vsub.s32 4, %v147
    %v172 = vsel %vm49, %v171, %v147
    %v173 = vsel %vm48, %v46, %v170
    %v174 = vsel %vm48, 0, %v172
    %v175 = vmul.f32 %v173, %v173
    %v176 = vmul.f32 %v175, -0.001358992
    %v177 = vadd.f32 %v176, 0.041655596
    %v178 = vmul.f32 %v175, %v177
    %v179 = vadd.f32 %v178, -0.4999988
    %v180 = vmul.f32 %v175, %v179
    %v181 = vadd.f32 1.0, %v180
    %v182 = vmul.f32 %v173, %v173
    %v183 = vmul.f32 %v182, -0.00019511016
    %v184 = vadd.f32 %v183, 0.008332121
    %v185 = vmul.f32 %v182, %v184
    %v186 = vadd.f32 %v185, -0.16666654
    %v187 = vmul.f32 %v182, %v186
    %v188 = vadd.f32 %v187, 1.0
    %v189 = vmul.f32 %v188, %v173
    %vm190 = vweird.f32 %v46
    %v191 = vand.u32 %v174, 3
    %vm192 = vcmp.lt.s32.totalorder %v191, 2
    %vm193 = vcmp.eq.s32.totalorder %v191, 0
    %v194 = vxor.u32 %v189, 2147483648
    %v195 = vsel %vm193, %v181, %v194
    %vm196 = vcmp.eq.s32.totalorder %v191, 2
    %v197 = vxor.u32 %v181, 2147483648
    %v198 = vsel %vm196, %v197, %v189
    %v199 = vsel %vm192, %v195, %v198
    %v200 = vsel %vm190, nan, %v199
    %v201 = vstv %s40
    %v202 = vmul.f32 %v201, %v200
    %v203 = vmul.f32 %v43, %v35
    %v204 = vmul.f32 %v203, 1.442695
    %v205 = vpow.pop %v204
    %v206 = vrcp.pop %v205
    %v207 = vmul.f32 %v205, %v206
    %v208 = vsub.f32 1.0, %v207
    %v209 = vmul.f32 %v206, %v208
    %v210 = vadd.f32 %v206, %v209
    %vm211 = vweird.f32 %v205
    %vm212 = vweird.f32 %v206
    %vm213 = vmor %vm211, %vm212
    %v214 = vsel %vm213, %v206, %v210
    %v215 = vand.u32 2147483647, %v205
    %vm216 = vcmp.eq.f32.partialorder %v215, 8.507059e+37
    %v217 = vand.u32 %v205, 2147483648
    %v218 = vor.u32 1.1754944e-38, %v217
    %v219 = vsel %vm216, %v218, %v214
    %v220 = vmul.f32 1.0, %v219
    %v221 = vstv %s41
    %v222 = vmul.f32 %v221, %v205
    %v223 = vstv %s42
    %v224 = vmul.f32 %v223, %v220
    %v225 = vadd.f32 %v222, %v224
    %v226 = vmul.f32 %v202, %v225
    %v227 = vadd.f32 %v37, %v226
    %s228 = sld [smem:[#allocation3 + $0x80]]
    %s229 = sld [smem:[#allocation3 + $0x81]]
    %s230 = sld [smem:[#allocation3 + $0x82]]
    %s231 = sld [smem:[#allocation3 + $0x83]]
    %s232 = sld [smem:[#allocation3 + $0x84]]
    %v233 = vstv %s228
    %v234 = vmul.f32 %v233, %v34
    %v235 = vstv %s229
    %v236 = vsub.f32 %v234, %v235
    %v237 = vand.u32 2147483647, %v236
    %vm238 = vcmp.le.f32.partialorder %v237, 0.7853982
    %vm239 = vcmp.lt.s32.totalorder %v236, 0
    %v240 = vand.u32 %v236, 2139095040
    %v241 = vshrl.u32 %v240, 23
    %v242 = vsub.s32 %v241, 127
    %v243 = vand.u32 2147483647, %v236
    %v244 = vand.u32 %v243, 8388607
    %v245 = vor.u32 %v244, 8388608
    %v246 = vsub.s32 0, %v245
    %v247 = vadd.s32 %v242, 1
    %vm248 = vcmp.gt.s32.totalorder %v247, 0
    %v249 = vsel %vm248, %v247, 0
    %v250 = vshrl.u32 %v249, 5
    %v251 = vand.u32 %v249, 31
    %v252 = vsub.s32 32, %v251
    %v253 = vshrl.u32 683565275, %v252
    %v254 = vshll.u32 683565275, %v251
    %v255 = vshrl.u32 2475754826, %v252
    %v256 = vor.u32 %v254, %v255
    %v257 = vshll.u32 2475754826, %v251
    %v258 = vshrl.u32 2131351028, %v252
    %v259 = vor.u32 %v257, %v258
    %v260 = vshll.u32 2131351028, %v251
    %v261 = vshrl.u32 2102212464, %v252
    %v262 = vor.u32 %v260, %v261
    %v263 = vshll.u32 2102212464, %v251
    %v264 = vshrl.u32 920167782, %v252
    %v265 = vor.u32 %v263, %v264
    %v266 = vshll.u32 920167782, %v251
    %v267 = vshrl.u32 1326507024, %v252
    %v268 = vor.u32 %v266, %v267
    %vm269 = vcmp.lt.s32.totalorder %v250, 1
    %vm270 = vcmp.lt.s32.totalorder %v250, 2
    %vm271 = vcmp.lt.s32.totalorder %v250, 3
    %vm272 = vcmp.lt.s32.totalorder %v250, 4
    %v273 = vsel %vm269, %v253, %v256
    %v274 = vsel %vm272, %v262, 2102212464
    %v275 = vsel %vm271, %v259, %v274
    %v276 = vsel %vm270, %v273, %v275
    %v277 = vsel %vm269, %v256, %v259
    %v278 = vsel %vm272, %v265, 920167782
    %v279 = vsel %vm271, %v262, %v278
    %v280 = vsel %vm270, %v277, %v279
    %v281 = vsel %vm269, %v259, %v262
    %v282 = vsel %vm272, %v268, 1326507024
    %v283 = vsel %vm271, %v265, %v282
    %v284 = vsel %vm270, %v281, %v283
    %v285 = vshll.u32 %v245, 8
    %v286 = vand.u32 %v285, 65535
    %v287 = vshrl.u32 %v285, 16
    %v288 = vand.u32 %v284, 65535
    %v289 = vshrl.u32 %v284, 16
    %v290 = vmul.u32 %v286, %v288
    %v291 = vmul.u32 %v286, %v289
    %v292 = vmul.u32 %v287, %v288
    %v293 = vmul.u32 %v287, %v289
    %v294 = vshll.u32 %v291, 16
    %v295 = vshrl.u32 %v291, 16
    %v296 = vshll.u32 %v292, 16
    %v297 = vshrl.u32 %v292, 16
    %vm298 = vc.u32 %v290, %v294
    %v299 = vsel %vm298, 1, 0
    %v300 = vadd.s32 %v290, %v294
    %v301 = vadd.s32 %v293, %v299
    %vm302 = vc.u32 %v300, %v296
    %v303 = vsel %vm302, 1, 0
    %v304 = vadd.s32 %v300, %v296
    %v305 = vadd.s32 %v301, %v303
    %v306 = vadd.s32 %v305, %v295
    %v307 = vadd.s32 %v306, %v297
    %v308 = vand.u32 %v285, 65535
    %v309 = vshrl.u32 %v285, 16
    %v310 = vand.u32 %v280, 65535
    %v311 = vshrl.u32 %v280, 16
    %v312 = vmul.u32 %v308, %v310
    %v313 = vmul.u32 %v308, %v311
    %v314 = vmul.u32 %v309, %v310
    %v315 = vmul.u32 %v309, %v311
    %v316 = vshll.u32 %v313, 16
    %v317 = vshrl.u32 %v313, 16
    %v318 = vshll.u32 %v314, 16
    %v319 = vshrl.u32 %v314, 16
    %vm320 = vc.u32 %v312, %v316
    %v321 = vsel %vm320, 1, 0
    %v322 = vadd.s32 %v312, %v316
    %v323 = vadd.s32 %v315, %v321
    %vm324 = vc.u32 %v322, %v318
    %v325 = vsel %vm324, 1, 0
    %v326 = vadd.s32 %v322, %v318
    %v327 = vadd.s32 %v323, %v325
    %v328 = vadd.s32 %v327, %v317
    %v329 = vadd.s32 %v328, %v319
    %v330 = vmul.u32 %v285, %v276
    %v331 = vadd.s32 %v307, %v326
    %vm332 = vc.u32 %v307, %v326
    %v333 = vadd.s32 %v329, 1
    %v334 = vsel %vm332, %v333, %v329
    %v335 = vadd.s32 %v330, %v334
    %v336 = vadd.s32 %v335, 536870912
    %v337 = vshrl.u32 %v336, 30
    %v338 = vshll.u32 %v337, 30
    %v339 = vsub.s32 %v335, %v338
    %vm340 = vcmp.lt.s32.totalorder %v339, 0
    %v341 = vsub.s32 0, %v339
    %v342 = vsel %vm340, %v341, %v339
    %v343 = vclz %v342
    %v344 = vsub.s32 %v343, 2
    %vm345 = vcmp.gt.s32.totalorder 0, %v344
    %v346 = vsel %vm345, 0, %v344
    %v347 = vsub.s32 32, %v346
    %v348 = vshll.u32 %v339, %v346
    %v349 = vshrl.u32 %v331, %v347
    %v350 = vor.u32 %v348, %v349
    %v351 = vsub.s32 4294967266, %v346
    %v352 = vadd.s32 %v351, 127
    %v353 = vshll.u32 %v352, 23
    %v354 = vor.u32 4788187, %v353
    %v355 = vand.u32 2147483647, %v354
    %v357 = vcvt.s32.f32 %v350
    %v358 = vmul.f32 %v357, %v355
    %v359 = vxor.u32 %v358, 2147483648
    %v360 = vsel %vm239, %v359, %v358
    %v361 = vsub.s32 4, %v337
    %v362 = vsel %vm239, %v361, %v337
    %v363 = vsel %vm238, %v236, %v360
    %v364 = vsel %vm238, 0, %v362
    %v365 = vmul.f32 %v363, %v363
    %v366 = vmul.f32 %v365, -0.001358992
    %v367 = vadd.f32 %v366, 0.041655596
    %v368 = vmul.f32 %v365, %v367
    %v369 = vadd.f32 %v368, -0.4999988
    %v370 = vmul.f32 %v365, %v369
    %v371 = vadd.f32 1.0, %v370
    %v372 = vmul.f32 %v363, %v363
    %v373 = vmul.f32 %v372, -0.00019511016
    %v374 = vadd.f32 %v373, 0.008332121
    %v375 = vmul.f32 %v372, %v374
    %v376 = vadd.f32 %v375, -0.16666654
    %v377 = vmul.f32 %v372, %v376
    %v378 = vadd.f32 %v377, 1.0
    %v379 = vmul.f32 %v378, %v363
    %vm380 = vweird.f32 %v236
    %v381 = vand.u32 %v364, 3
    %vm382 = vcmp.lt.s32.totalorder %v381, 2
    %vm383 = vcmp.eq.s32.totalorder %v381, 0
    %v384 = vxor.u32 %v379, 2147483648
    %v385 = vsel %vm383, %v371, %v384
    %vm386 = vcmp.eq.s32.totalorder %v381, 2
    %v387 = vxor.u32 %v371, 2147483648
    %v388 = vsel %vm386, %v387, %v379
    %v389 = vsel %vm382, %v385, %v388
    %v390 = vsel %vm380, nan, %v389
    %v391 = vstv %s230
    %v392 = vmul.f32 %v391, %v390
    %v393 = vmul.f32 %v233, %v35
    %v394 = vmul.f32 %v393, 1.442695
    %v395 = vpow.pop %v394
    %v396 = vrcp.pop %v395
    %v397 = vmul.f32 %v395, %v396
    %v398 = vsub.f32 1.0, %v397
    %v399 = vmul.f32 %v396, %v398
    %v400 = vadd.f32 %v396, %v399
    %vm401 = vweird.f32 %v395
    %vm402 = vweird.f32 %v396
    %vm403 = vmor %vm401, %vm402
    %v404 = vsel %vm403, %v396, %v400
    %v405 = vand.u32 2147483647, %v395
    %vm406 = vcmp.eq.f32.partialorder %v405, 8.507059e+37
    %v407 = vand.u32 %v395, 2147483648
    %v408 = vor.u32 1.1754944e-38, %v407
    %v409 = vsel %vm406, %v408, %v404
    %v410 = vmul.f32 1.0, %v409
    %v411 = vstv %s231
    %v412 = vmul.f32 %v411, %v395
    %v413 = vstv %s232
    %v414 = vmul.f32 %v413, %v410
    %v415 = vadd.f32 %v412, %v414
    %v416 = vmul.f32 %v392, %v415
    %v417 = vadd.f32 %v227, %v416
    %s418 = sld [smem:[#allocation3 + $0x100]]
    %s419 = sld [smem:[#allocation3 + $0x101]]
    %s420 = sld [smem:[#allocation3 + $0x102]]
    %s421 = sld [smem:[#allocation3 + $0x103]]
    %s422 = sld [smem:[#allocation3 + $0x104]]
    %v423 = vstv %s418
    %v424 = vmul.f32 %v423, %v34
    %v425 = vstv %s419
    %v426 = vsub.f32 %v424, %v425
    %v427 = vand.u32 2147483647, %v426
    %vm428 = vcmp.le.f32.partialorder %v427, 0.7853982
    %vm429 = vcmp.lt.s32.totalorder %v426, 0
    %v430 = vand.u32 %v426, 2139095040
    %v431 = vshrl.u32 %v430, 23
    %v432 = vsub.s32 %v431, 127
    %v433 = vand.u32 2147483647, %v426
    %v434 = vand.u32 %v433, 8388607
    %v435 = vor.u32 %v434, 8388608
    %v436 = vsub.s32 0, %v435
    %v437 = vadd.s32 %v432, 1
    %vm438 = vcmp.gt.s32.totalorder %v437, 0
    %v439 = vsel %vm438, %v437, 0
    %v440 = vshrl.u32 %v439, 5
    %v441 = vand.u32 %v439, 31
    %v442 = vsub.s32 32, %v441
    %v443 = vshrl.u32 683565275, %v442
    %v444 = vshll.u32 683565275, %v441
    %v445 = vshrl.u32 2475754826, %v442
    %v446 = vor.u32 %v444, %v445
    %v447 = vshll.u32 2475754826, %v441
    %v448 = vshrl.u32 2131351028, %v442
    %v449 = vor.u32 %v447, %v448
    %v450 = vshll.u32 2131351028, %v441
    %v451 = vshrl.u32 2102212464, %v442
    %v452 = vor.u32 %v450, %v451
    %v453 = vshll.u32 2102212464, %v441
    %v454 = vshrl.u32 920167782, %v442
    %v455 = vor.u32 %v453, %v454
    %v456 = vshll.u32 920167782, %v441
    %v457 = vshrl.u32 1326507024, %v442
    %v458 = vor.u32 %v456, %v457
    %vm459 = vcmp.lt.s32.totalorder %v440, 1
    %vm460 = vcmp.lt.s32.totalorder %v440, 2
    %vm461 = vcmp.lt.s32.totalorder %v440, 3
    %vm462 = vcmp.lt.s32.totalorder %v440, 4
    %v463 = vsel %vm459, %v443, %v446
    %v464 = vsel %vm462, %v452, 2102212464
    %v465 = vsel %vm461, %v449, %v464
    %v466 = vsel %vm460, %v463, %v465
    %v467 = vsel %vm459, %v446, %v449
    %v468 = vsel %vm462, %v455, 920167782
    %v469 = vsel %vm461, %v452, %v468
    %v470 = vsel %vm460, %v467, %v469
    %v471 = vsel %vm459, %v449, %v452
    %v472 = vsel %vm462, %v458, 1326507024
    %v473 = vsel %vm461, %v455, %v472
    %v474 = vsel %vm460, %v471, %v473
    %v475 = vshll.u32 %v435, 8
    %v476 = vand.u32 %v475, 65535
    %v477 = vshrl.u32 %v475, 16
    %v478 = vand.u32 %v474, 65535
    %v479 = vshrl.u32 %v474, 16
    %v480 = vmul.u32 %v476, %v478
    %v481 = vmul.u32 %v476, %v479
    %v482 = vmul.u32 %v477, %v478
    %v483 = vmul.u32 %v477, %v479
    %v484 = vshll.u32 %v481, 16
    %v485 = vshrl.u32 %v481, 16
    %v486 = vshll.u32 %v482, 16
    %v487 = vshrl.u32 %v482, 16
    %vm488 = vc.u32 %v480, %v484
    %v489 = vsel %vm488, 1, 0
    %v490 = vadd.s32 %v480, %v484
    %v491 = vadd.s32 %v483, %v489
    %vm492 = vc.u32 %v490, %v486
    %v493 = vsel %vm492, 1, 0
    %v494 = vadd.s32 %v490, %v486
    %v495 = vadd.s32 %v491, %v493
    %v496 = vadd.s32 %v495, %v485
    %v497 = vadd.s32 %v496, %v487
    %v498 = vand.u32 %v475, 65535
    %v499 = vshrl.u32 %v475, 16
    %v500 = vand.u32 %v470, 65535
    %v501 = vshrl.u32 %v470, 16
    %v502 = vmul.u32 %v498, %v500
    %v503 = vmul.u32 %v498, %v501
    %v504 = vmul.u32 %v499, %v500
    %v505 = vmul.u32 %v499, %v501
    %v506 = vshll.u32 %v503, 16
    %v507 = vshrl.u32 %v503, 16
    %v508 = vshll.u32 %v504, 16
    %v509 = vshrl.u32 %v504, 16
    %vm510 = vc.u32 %v502, %v506
    %v511 = vsel %vm510, 1, 0
    %v512 = vadd.s32 %v502, %v506
    %v513 = vadd.s32 %v505, %v511
    %vm514 = vc.u32 %v512, %v508
    %v515 = vsel %vm514, 1, 0
    %v516 = vadd.s32 %v512, %v508
    %v517 = vadd.s32 %v513, %v515
    %v518 = vadd.s32 %v517, %v507
    %v519 = vadd.s32 %v518, %v509
    %v520 = vmul.u32 %v475, %v466
    %v521 = vadd.s32 %v497, %v516
    %vm522 = vc.u32 %v497, %v516
    %v523 = vadd.s32 %v519, 1
    %v524 = vsel %vm522, %v523, %v519
    %v525 = vadd.s32 %v520, %v524
    %v526 = vadd.s32 %v525, 536870912
    %v527 = vshrl.u32 %v526, 30
    %v528 = vshll.u32 %v527, 30
    %v529 = vsub.s32 %v525, %v528
    %vm530 = vcmp.lt.s32.totalorder %v529, 0
    %v531 = vsub.s32 0, %v529
    %v532 = vsel %vm530, %v531, %v529
    %v533 = vclz %v532
    %v534 = vsub.s32 %v533, 2
    %vm535 = vcmp.gt.s32.totalorder 0, %v534
    %v536 = vsel %vm535, 0, %v534
    %v537 = vsub.s32 32, %v536
    %v538 = vshll.u32 %v529, %v536
    %v539 = vshrl.u32 %v521, %v537
    %v540 = vor.u32 %v538, %v539
    %v541 = vsub.s32 4294967266, %v536
    %v542 = vadd.s32 %v541, 127
    %v543 = vshll.u32 %v542, 23
    %v544 = vor.u32 4788187, %v543
    %v545 = vand.u32 2147483647, %v544
    %v547 = vcvt.s32.f32 %v540
    %v548 = vmul.f32 %v547, %v545
    %v549 = vxor.u32 %v548, 2147483648
    %v550 = vsel %vm429, %v549, %v548
    %v551 = vsub.s32 4, %v527
    %v552 = vsel %vm429, %v551, %v527
    %v553 = vsel %vm428, %v426, %v550
    %v554 = vsel %vm428, 0, %v552
    %v555 = vmul.f32 %v553, %v553
    %v556 = vmul.f32 %v555, -0.001358992
    %v557 = vadd.f32 %v556, 0.041655596
    %v558 = vmul.f32 %v555, %v557
    %v559 = vadd.f32 %v558, -0.4999988
    %v560 = vmul.f32 %v555, %v559
    %v561 = vadd.f32 1.0, %v560
    %v562 = vmul.f32 %v553, %v553
    %v563 = vmul.f32 %v562, -0.00019511016
    %v564 = vadd.f32 %v563, 0.008332121
    %v565 = vmul.f32 %v562, %v564
    %v566 = vadd.f32 %v565, -0.16666654
    %v567 = vmul.f32 %v562, %v566
    %v568 = vadd.f32 %v567, 1.0
    %v569 = vmul.f32 %v568, %v553
    %vm570 = vweird.f32 %v426
    %v571 = vand.u32 %v554, 3
    %vm572 = vcmp.lt.s32.totalorder %v571, 2
    %vm573 = vcmp.eq.s32.totalorder %v571, 0
    %v574 = vxor.u32 %v569, 2147483648
    %v575 = vsel %vm573, %v561, %v574
    %vm576 = vcmp.eq.s32.totalorder %v571, 2
    %v577 = vxor.u32 %v561, 2147483648
    %v578 = vsel %vm576, %v577, %v569
    %v579 = vsel %vm572, %v575, %v578
    %v580 = vsel %vm570, nan, %v579
    %v581 = vstv %s420
    %v582 = vmul.f32 %v581, %v580
    %v583 = vmul.f32 %v423, %v35
    %v584 = vmul.f32 %v583, 1.442695
    %v585 = vpow.pop %v584
    %v586 = vrcp.pop %v585
    %v587 = vmul.f32 %v585, %v586
    %v588 = vsub.f32 1.0, %v587
    %v589 = vmul.f32 %v586, %v588
    %v590 = vadd.f32 %v586, %v589
    %vm591 = vweird.f32 %v585
    %vm592 = vweird.f32 %v586
    %vm593 = vmor %vm591, %vm592
    %v594 = vsel %vm593, %v586, %v590
    %v595 = vand.u32 2147483647, %v585
    %vm596 = vcmp.eq.f32.partialorder %v595, 8.507059e+37
    %v597 = vand.u32 %v585, 2147483648
    %v598 = vor.u32 1.1754944e-38, %v597
    %v599 = vsel %vm596, %v598, %v594
    %v600 = vmul.f32 1.0, %v599
    %v601 = vstv %s421
    %v602 = vmul.f32 %v601, %v585
    %v603 = vstv %s422
    %v604 = vmul.f32 %v603, %v600
    %v605 = vadd.f32 %v602, %v604
    %v606 = vmul.f32 %v582, %v605
    %v607 = vadd.f32 %v417, %v606
    %s608 = sld [smem:[#allocation3 + $0x180]]
    %s609 = sld [smem:[#allocation3 + $0x181]]
    %s610 = sld [smem:[#allocation3 + $0x182]]
    %s611 = sld [smem:[#allocation3 + $0x183]]
    %s612 = sld [smem:[#allocation3 + $0x184]]
    %v613 = vstv %s608
    %v614 = vmul.f32 %v613, %v34
    %v615 = vstv %s609
    %v616 = vsub.f32 %v614, %v615
    %v617 = vand.u32 2147483647, %v616
    %vm618 = vcmp.le.f32.partialorder %v617, 0.7853982
    %vm619 = vcmp.lt.s32.totalorder %v616, 0
    %v620 = vand.u32 %v616, 2139095040
    %v621 = vshrl.u32 %v620, 23
    %v622 = vsub.s32 %v621, 127
    %v623 = vand.u32 2147483647, %v616
    %v624 = vand.u32 %v623, 8388607
    %v625 = vor.u32 %v624, 8388608
    %v626 = vsub.s32 0, %v625
    %v627 = vadd.s32 %v622, 1
    %vm628 = vcmp.gt.s32.totalorder %v627, 0
    %v629 = vsel %vm628, %v627, 0
    %v630 = vshrl.u32 %v629, 5
    %v631 = vand.u32 %v629, 31
    %v632 = vsub.s32 32, %v631
    %v633 = vshrl.u32 683565275, %v632
    %v634 = vshll.u32 683565275, %v631
    %v635 = vshrl.u32 2475754826, %v632
    %v636 = vor.u32 %v634, %v635
    %v637 = vshll.u32 2475754826, %v631
    %v638 = vshrl.u32 2131351028, %v632
    %v639 = vor.u32 %v637, %v638
    %v640 = vshll.u32 2131351028, %v631
    %v641 = vshrl.u32 2102212464, %v632
    %v642 = vor.u32 %v640, %v641
    %v643 = vshll.u32 2102212464, %v631
    %v644 = vshrl.u32 920167782, %v632
    %v645 = vor.u32 %v643, %v644
    %v646 = vshll.u32 920167782, %v631
    %v647 = vshrl.u32 1326507024, %v632
    %v648 = vor.u32 %v646, %v647
    %vm649 = vcmp.lt.s32.totalorder %v630, 1
    %vm650 = vcmp.lt.s32.totalorder %v630, 2
    %vm651 = vcmp.lt.s32.totalorder %v630, 3
    %vm652 = vcmp.lt.s32.totalorder %v630, 4
    %v653 = vsel %vm649, %v633, %v636
    %v654 = vsel %vm652, %v642, 2102212464
    %v655 = vsel %vm651, %v639, %v654
    %v656 = vsel %vm650, %v653, %v655
    %v657 = vsel %vm649, %v636, %v639
    %v658 = vsel %vm652, %v645, 920167782
    %v659 = vsel %vm651, %v642, %v658
    %v660 = vsel %vm650, %v657, %v659
    %v661 = vsel %vm649, %v639, %v642
    %v662 = vsel %vm652, %v648, 1326507024
    %v663 = vsel %vm651, %v645, %v662
    %v664 = vsel %vm650, %v661, %v663
    %v665 = vshll.u32 %v625, 8
    %v666 = vand.u32 %v665, 65535
    %v667 = vshrl.u32 %v665, 16
    %v668 = vand.u32 %v664, 65535
    %v669 = vshrl.u32 %v664, 16
    %v670 = vmul.u32 %v666, %v668
    %v671 = vmul.u32 %v666, %v669
    %v672 = vmul.u32 %v667, %v668
    %v673 = vmul.u32 %v667, %v669
    %v674 = vshll.u32 %v671, 16
    %v675 = vshrl.u32 %v671, 16
    %v676 = vshll.u32 %v672, 16
    %v677 = vshrl.u32 %v672, 16
    %vm678 = vc.u32 %v670, %v674
    %v679 = vsel %vm678, 1, 0
    %v680 = vadd.s32 %v670, %v674
    %v681 = vadd.s32 %v673, %v679
    %vm682 = vc.u32 %v680, %v676
    %v683 = vsel %vm682, 1, 0
    %v684 = vadd.s32 %v680, %v676
    %v685 = vadd.s32 %v681, %v683
    %v686 = vadd.s32 %v685, %v675
    %v687 = vadd.s32 %v686, %v677
    %v688 = vand.u32 %v665, 65535
    %v689 = vshrl.u32 %v665, 16
    %v690 = vand.u32 %v660, 65535
    %v691 = vshrl.u32 %v660, 16
    %v692 = vmul.u32 %v688, %v690
    %v693 = vmul.u32 %v688, %v691
    %v694 = vmul.u32 %v689, %v690
    %v695 = vmul.u32 %v689, %v691
    %v696 = vshll.u32 %v693, 16
    %v697 = vshrl.u32 %v693, 16
    %v698 = vshll.u32 %v694, 16
    %v699 = vshrl.u32 %v694, 16
    %vm700 = vc.u32 %v692, %v696
    %v701 = vsel %vm700, 1, 0
    %v702 = vadd.s32 %v692, %v696
    %v703 = vadd.s32 %v695, %v701
    %vm704 = vc.u32 %v702, %v698
    %v705 = vsel %vm704, 1, 0
    %v706 = vadd.s32 %v702, %v698
    %v707 = vadd.s32 %v703, %v705
    %v708 = vadd.s32 %v707, %v697
    %v709 = vadd.s32 %v708, %v699
    %v710 = vmul.u32 %v665, %v656
    %v711 = vadd.s32 %v687, %v706
    %vm712 = vc.u32 %v687, %v706
    %v713 = vadd.s32 %v709, 1
    %v714 = vsel %vm712, %v713, %v709
    %v715 = vadd.s32 %v710, %v714
    %v716 = vadd.s32 %v715, 536870912
    %v717 = vshrl.u32 %v716, 30
    %v718 = vshll.u32 %v717, 30
    %v719 = vsub.s32 %v715, %v718
    %vm720 = vcmp.lt.s32.totalorder %v719, 0
    %v721 = vsub.s32 0, %v719
    %v722 = vsel %vm720, %v721, %v719
    %v723 = vclz %v722
    %v724 = vsub.s32 %v723, 2
    %vm725 = vcmp.gt.s32.totalorder 0, %v724
    %v726 = vsel %vm725, 0, %v724
    %v727 = vsub.s32 32, %v726
    %v728 = vshll.u32 %v719, %v726
    %v729 = vshrl.u32 %v711, %v727
    %v730 = vor.u32 %v728, %v729
    %v731 = vsub.s32 4294967266, %v726
    %v732 = vadd.s32 %v731, 127
    %v733 = vshll.u32 %v732, 23
    %v734 = vor.u32 4788187, %v733
    %v735 = vand.u32 2147483647, %v734
    %v737 = vcvt.s32.f32 %v730
    %v738 = vmul.f32 %v737, %v735
    %v739 = vxor.u32 %v738, 2147483648
    %v740 = vsel %vm619, %v739, %v738
    %v741 = vsub.s32 4, %v717
    %v742 = vsel %vm619, %v741, %v717
    %v743 = vsel %vm618, %v616, %v740
    %v744 = vsel %vm618, 0, %v742
    %v745 = vmul.f32 %v743, %v743
    %v746 = vmul.f32 %v745, -0.001358992
    %v747 = vadd.f32 %v746, 0.041655596
    %v748 = vmul.f32 %v745, %v747
    %v749 = vadd.f32 %v748, -0.4999988
    %v750 = vmul.f32 %v745, %v749
    %v751 = vadd.f32 1.0, %v750
    %v752 = vmul.f32 %v743, %v743
    %v753 = vmul.f32 %v752, -0.00019511016
    %v754 = vadd.f32 %v753, 0.008332121
    %v755 = vmul.f32 %v752, %v754
    %v756 = vadd.f32 %v755, -0.16666654
    %v757 = vmul.f32 %v752, %v756
    %v758 = vadd.f32 %v757, 1.0
    %v759 = vmul.f32 %v758, %v743
    %vm760 = vweird.f32 %v616
    %v761 = vand.u32 %v744, 3
    %vm762 = vcmp.lt.s32.totalorder %v761, 2
    %vm763 = vcmp.eq.s32.totalorder %v761, 0
    %v764 = vxor.u32 %v759, 2147483648
    %v765 = vsel %vm763, %v751, %v764
    %vm766 = vcmp.eq.s32.totalorder %v761, 2
    %v767 = vxor.u32 %v751, 2147483648
    %v768 = vsel %vm766, %v767, %v759
    %v769 = vsel %vm762, %v765, %v768
    %v770 = vsel %vm760, nan, %v769
    %v771 = vstv %s610
    %v772 = vmul.f32 %v771, %v770
    %v773 = vmul.f32 %v613, %v35
    %v774 = vmul.f32 %v773, 1.442695
    %v775 = vpow.pop %v774
    %v776 = vrcp.pop %v775
    %v777 = vmul.f32 %v775, %v776
    %v778 = vsub.f32 1.0, %v777
    %v779 = vmul.f32 %v776, %v778
    %v780 = vadd.f32 %v776, %v779
    %vm781 = vweird.f32 %v775
    %vm782 = vweird.f32 %v776
    %vm783 = vmor %vm781, %vm782
    %v784 = vsel %vm783, %v776, %v780
    %v785 = vand.u32 2147483647, %v775
    %vm786 = vcmp.eq.f32.partialorder %v785, 8.507059e+37
    %v787 = vand.u32 %v775, 2147483648
    %v788 = vor.u32 1.1754944e-38, %v787
    %v789 = vsel %vm786, %v788, %v784
    %v790 = vmul.f32 1.0, %v789
    %v791 = vstv %s611
    %v792 = vmul.f32 %v791, %v775
    %v793 = vstv %s612
    %v794 = vmul.f32 %v793, %v790
    %v795 = vadd.f32 %v792, %v794
    %v796 = vmul.f32 %v772, %v795
    %v797 = vadd.f32 %v607, %v796
    %s798 = sld [smem:[#allocation3 + $0x200]]
    %s799 = sld [smem:[#allocation3 + $0x201]]
    %s800 = sld [smem:[#allocation3 + $0x202]]
    %s801 = sld [smem:[#allocation3 + $0x203]]
    %s802 = sld [smem:[#allocation3 + $0x204]]
    %v803 = vstv %s798
    %v804 = vmul.f32 %v803, %v34
    %v805 = vstv %s799
    %v806 = vsub.f32 %v804, %v805
    %v807 = vand.u32 2147483647, %v806
    %vm808 = vcmp.le.f32.partialorder %v807, 0.7853982
    %vm809 = vcmp.lt.s32.totalorder %v806, 0
    %v810 = vand.u32 %v806, 2139095040
    %v811 = vshrl.u32 %v810, 23
    %v812 = vsub.s32 %v811, 127
    %v813 = vand.u32 2147483647, %v806
    %v814 = vand.u32 %v813, 8388607
    %v815 = vor.u32 %v814, 8388608
    %v816 = vsub.s32 0, %v815
    %v817 = vadd.s32 %v812, 1
    %vm818 = vcmp.gt.s32.totalorder %v817, 0
    %v819 = vsel %vm818, %v817, 0
    %v820 = vshrl.u32 %v819, 5
    %v821 = vand.u32 %v819, 31
    %v822 = vsub.s32 32, %v821
    %v823 = vshrl.u32 683565275, %v822
    %v824 = vshll.u32 683565275, %v821
    %v825 = vshrl.u32 2475754826, %v822
    %v826 = vor.u32 %v824, %v825
    %v827 = vshll.u32 2475754826, %v821
    %v828 = vshrl.u32 2131351028, %v822
    %v829 = vor.u32 %v827, %v828
    %v830 = vshll.u32 2131351028, %v821
    %v831 = vshrl.u32 2102212464, %v822
    %v832 = vor.u32 %v830, %v831
    %v833 = vshll.u32 2102212464, %v821
    %v834 = vshrl.u32 920167782, %v822
    %v835 = vor.u32 %v833, %v834
    %v836 = vshll.u32 920167782, %v821
    %v837 = vshrl.u32 1326507024, %v822
    %v838 = vor.u32 %v836, %v837
    %vm839 = vcmp.lt.s32.totalorder %v820, 1
    %vm840 = vcmp.lt.s32.totalorder %v820, 2
    %vm841 = vcmp.lt.s32.totalorder %v820, 3
    %vm842 = vcmp.lt.s32.totalorder %v820, 4
    %v843 = vsel %vm839, %v823, %v826
    %v844 = vsel %vm842, %v832, 2102212464
    %v845 = vsel %vm841, %v829, %v844
    %v846 = vsel %vm840, %v843, %v845
    %v847 = vsel %vm839, %v826, %v829
    %v848 = vsel %vm842, %v835, 920167782
    %v849 = vsel %vm841, %v832, %v848
    %v850 = vsel %vm840, %v847, %v849
    %v851 = vsel %vm839, %v829, %v832
    %v852 = vsel %vm842, %v838, 1326507024
    %v853 = vsel %vm841, %v835, %v852
    %v854 = vsel %vm840, %v851, %v853
    %v855 = vshll.u32 %v815, 8
    %v856 = vand.u32 %v855, 65535
    %v857 = vshrl.u32 %v855, 16
    %v858 = vand.u32 %v854, 65535
    %v859 = vshrl.u32 %v854, 16
    %v860 = vmul.u32 %v856, %v858
    %v861 = vmul.u32 %v856, %v859
    %v862 = vmul.u32 %v857, %v858
    %v863 = vmul.u32 %v857, %v859
    %v864 = vshll.u32 %v861, 16
    %v865 = vshrl.u32 %v861, 16
    %v866 = vshll.u32 %v862, 16
    %v867 = vshrl.u32 %v862, 16
    %vm868 = vc.u32 %v860, %v864
    %v869 = vsel %vm868, 1, 0
    %v870 = vadd.s32 %v860, %v864
    %v871 = vadd.s32 %v863, %v869
    %vm872 = vc.u32 %v870, %v866
    %v873 = vsel %vm872, 1, 0
    %v874 = vadd.s32 %v870, %v866
    %v875 = vadd.s32 %v871, %v873
    %v876 = vadd.s32 %v875, %v865
    %v877 = vadd.s32 %v876, %v867
    %v878 = vand.u32 %v855, 65535
    %v879 = vshrl.u32 %v855, 16
    %v880 = vand.u32 %v850, 65535
    %v881 = vshrl.u32 %v850, 16
    %v882 = vmul.u32 %v878, %v880
    %v883 = vmul.u32 %v878, %v881
    %v884 = vmul.u32 %v879, %v880
    %v885 = vmul.u32 %v879, %v881
    %v886 = vshll.u32 %v883, 16
    %v887 = vshrl.u32 %v883, 16
    %v888 = vshll.u32 %v884, 16
    %v889 = vshrl.u32 %v884, 16
    %vm890 = vc.u32 %v882, %v886
    %v891 = vsel %vm890, 1, 0
    %v892 = vadd.s32 %v882, %v886
    %v893 = vadd.s32 %v885, %v891
    %vm894 = vc.u32 %v892, %v888
    %v895 = vsel %vm894, 1, 0
    %v896 = vadd.s32 %v892, %v888
    %v897 = vadd.s32 %v893, %v895
    %v898 = vadd.s32 %v897, %v887
    %v899 = vadd.s32 %v898, %v889
    %v900 = vmul.u32 %v855, %v846
    %v901 = vadd.s32 %v877, %v896
    %vm902 = vc.u32 %v877, %v896
    %v903 = vadd.s32 %v899, 1
    %v904 = vsel %vm902, %v903, %v899
    %v905 = vadd.s32 %v900, %v904
    %v906 = vadd.s32 %v905, 536870912
    %v907 = vshrl.u32 %v906, 30
    %v908 = vshll.u32 %v907, 30
    %v909 = vsub.s32 %v905, %v908
    %vm910 = vcmp.lt.s32.totalorder %v909, 0
    %v911 = vsub.s32 0, %v909
    %v912 = vsel %vm910, %v911, %v909
    %v913 = vclz %v912
    %v914 = vsub.s32 %v913, 2
    %vm915 = vcmp.gt.s32.totalorder 0, %v914
    %v916 = vsel %vm915, 0, %v914
    %v917 = vsub.s32 32, %v916
    %v918 = vshll.u32 %v909, %v916
    %v919 = vshrl.u32 %v901, %v917
    %v920 = vor.u32 %v918, %v919
    %v921 = vsub.s32 4294967266, %v916
    %v922 = vadd.s32 %v921, 127
    %v923 = vshll.u32 %v922, 23
    %v924 = vor.u32 4788187, %v923
    %v925 = vand.u32 2147483647, %v924
    %v927 = vcvt.s32.f32 %v920
    %v928 = vmul.f32 %v927, %v925
    %v929 = vxor.u32 %v928, 2147483648
    %v930 = vsel %vm809, %v929, %v928
    %v931 = vsub.s32 4, %v907
    %v932 = vsel %vm809, %v931, %v907
    %v933 = vsel %vm808, %v806, %v930
    %v934 = vsel %vm808, 0, %v932
    %v935 = vmul.f32 %v933, %v933
    %v936 = vmul.f32 %v935, -0.001358992
    %v937 = vadd.f32 %v936, 0.041655596
    %v938 = vmul.f32 %v935, %v937
    %v939 = vadd.f32 %v938, -0.4999988
    %v940 = vmul.f32 %v935, %v939
    %v941 = vadd.f32 1.0, %v940
    %v942 = vmul.f32 %v933, %v933
    %v943 = vmul.f32 %v942, -0.00019511016
    %v944 = vadd.f32 %v943, 0.008332121
    %v945 = vmul.f32 %v942, %v944
    %v946 = vadd.f32 %v945, -0.16666654
    %v947 = vmul.f32 %v942, %v946
    %v948 = vadd.f32 %v947, 1.0
    %v949 = vmul.f32 %v948, %v933
    %vm950 = vweird.f32 %v806
    %v951 = vand.u32 %v934, 3
    %vm952 = vcmp.lt.s32.totalorder %v951, 2
    %vm953 = vcmp.eq.s32.totalorder %v951, 0
    %v954 = vxor.u32 %v949, 2147483648
    %v955 = vsel %vm953, %v941, %v954
    %vm956 = vcmp.eq.s32.totalorder %v951, 2
    %v957 = vxor.u32 %v941, 2147483648
    %v958 = vsel %vm956, %v957, %v949
    %v959 = vsel %vm952, %v955, %v958
    %v960 = vsel %vm950, nan, %v959
    %v961 = vstv %s800
    %v962 = vmul.f32 %v961, %v960
    %v963 = vmul.f32 %v803, %v35
    %v964 = vmul.f32 %v963, 1.442695
    %v965 = vpow.pop %v964
    %v966 = vrcp.pop %v965
    %v967 = vmul.f32 %v965, %v966
    %v968 = vsub.f32 1.0, %v967
    %v969 = vmul.f32 %v966, %v968
    %v970 = vadd.f32 %v966, %v969
    %vm971 = vweird.f32 %v965
    %vm972 = vweird.f32 %v966
    %vm973 = vmor %vm971, %vm972
    %v974 = vsel %vm973, %v966, %v970
    %v975 = vand.u32 2147483647, %v965
    %vm976 = vcmp.eq.f32.partialorder %v975, 8.507059e+37
    %v977 = vand.u32 %v965, 2147483648
    %v978 = vor.u32 1.1754944e-38, %v977
    %v979 = vsel %vm976, %v978, %v974
    %v980 = vmul.f32 1.0, %v979
    %v981 = vstv %s801
    %v982 = vmul.f32 %v981, %v965
    %v983 = vstv %s802
    %v984 = vmul.f32 %v983, %v980
    %v985 = vadd.f32 %v982, %v984
    %v986 = vmul.f32 %v962, %v985
    %v987 = vadd.f32 %v797, %v986
    %s988 = sld [smem:[#allocation3 + $0x280]]
    %s989 = sld [smem:[#allocation3 + $0x281]]
    %s990 = sld [smem:[#allocation3 + $0x282]]
    %s991 = sld [smem:[#allocation3 + $0x283]]
    %s992 = sld [smem:[#allocation3 + $0x284]]
    %v993 = vstv %s988
    %v994 = vmul.f32 %v993, %v34
    %v995 = vstv %s989
    %v996 = vsub.f32 %v994, %v995
    %v997 = vand.u32 2147483647, %v996
    %vm998 = vcmp.le.f32.partialorder %v997, 0.7853982
    %vm999 = vcmp.lt.s32.totalorder %v996, 0
    %v1000 = vand.u32 %v996, 2139095040
    %v1001 = vshrl.u32 %v1000, 23
    %v1002 = vsub.s32 %v1001, 127
    %v1003 = vand.u32 2147483647, %v996
    %v1004 = vand.u32 %v1003, 8388607
    %v1005 = vor.u32 %v1004, 8388608
    %v1006 = vsub.s32 0, %v1005
    %v1007 = vadd.s32 %v1002, 1
    %vm1008 = vcmp.gt.s32.totalorder %v1007, 0
    %v1009 = vsel %vm1008, %v1007, 0
    %v1010 = vshrl.u32 %v1009, 5
    %v1011 = vand.u32 %v1009, 31
    %v1012 = vsub.s32 32, %v1011
    %v1013 = vshrl.u32 683565275, %v1012
    %v1014 = vshll.u32 683565275, %v1011
    %v1015 = vshrl.u32 2475754826, %v1012
    %v1016 = vor.u32 %v1014, %v1015
    %v1017 = vshll.u32 2475754826, %v1011
    %v1018 = vshrl.u32 2131351028, %v1012
    %v1019 = vor.u32 %v1017, %v1018
    %v1020 = vshll.u32 2131351028, %v1011
    %v1021 = vshrl.u32 2102212464, %v1012
    %v1022 = vor.u32 %v1020, %v1021
    %v1023 = vshll.u32 2102212464, %v1011
    %v1024 = vshrl.u32 920167782, %v1012
    %v1025 = vor.u32 %v1023, %v1024
    %v1026 = vshll.u32 920167782, %v1011
    %v1027 = vshrl.u32 1326507024, %v1012
    %v1028 = vor.u32 %v1026, %v1027
    %vm1029 = vcmp.lt.s32.totalorder %v1010, 1
    %vm1030 = vcmp.lt.s32.totalorder %v1010, 2
    %vm1031 = vcmp.lt.s32.totalorder %v1010, 3
    %vm1032 = vcmp.lt.s32.totalorder %v1010, 4
    %v1033 = vsel %vm1029, %v1013, %v1016
    %v1034 = vsel %vm1032, %v1022, 2102212464
    %v1035 = vsel %vm1031, %v1019, %v1034
    %v1036 = vsel %vm1030, %v1033, %v1035
    %v1037 = vsel %vm1029, %v1016, %v1019
    %v1038 = vsel %vm1032, %v1025, 920167782
    %v1039 = vsel %vm1031, %v1022, %v1038
    %v1040 = vsel %vm1030, %v1037, %v1039
    %v1041 = vsel %vm1029, %v1019, %v1022
    %v1042 = vsel %vm1032, %v1028, 1326507024
    %v1043 = vsel %vm1031, %v1025, %v1042
    %v1044 = vsel %vm1030, %v1041, %v1043
    %v1045 = vshll.u32 %v1005, 8
    %v1046 = vand.u32 %v1045, 65535
    %v1047 = vshrl.u32 %v1045, 16
    %v1048 = vand.u32 %v1044, 65535
    %v1049 = vshrl.u32 %v1044, 16
    %v1050 = vmul.u32 %v1046, %v1048
    %v1051 = vmul.u32 %v1046, %v1049
    %v1052 = vmul.u32 %v1047, %v1048
    %v1053 = vmul.u32 %v1047, %v1049
    %v1054 = vshll.u32 %v1051, 16
    %v1055 = vshrl.u32 %v1051, 16
    %v1056 = vshll.u32 %v1052, 16
    %v1057 = vshrl.u32 %v1052, 16
    %vm1058 = vc.u32 %v1050, %v1054
    %v1059 = vsel %vm1058, 1, 0
    %v1060 = vadd.s32 %v1050, %v1054
    %v1061 = vadd.s32 %v1053, %v1059
    %vm1062 = vc.u32 %v1060, %v1056
    %v1063 = vsel %vm1062, 1, 0
    %v1064 = vadd.s32 %v1060, %v1056
    %v1065 = vadd.s32 %v1061, %v1063
    %v1066 = vadd.s32 %v1065, %v1055
    %v1067 = vadd.s32 %v1066, %v1057
    %v1068 = vand.u32 %v1045, 65535
    %v1069 = vshrl.u32 %v1045, 16
    %v1070 = vand.u32 %v1040, 65535
    %v1071 = vshrl.u32 %v1040, 16
    %v1072 = vmul.u32 %v1068, %v1070
    %v1073 = vmul.u32 %v1068, %v1071
    %v1074 = vmul.u32 %v1069, %v1070
    %v1075 = vmul.u32 %v1069, %v1071
    %v1076 = vshll.u32 %v1073, 16
    %v1077 = vshrl.u32 %v1073, 16
    %v1078 = vshll.u32 %v1074, 16
    %v1079 = vshrl.u32 %v1074, 16
    %vm1080 = vc.u32 %v1072, %v1076
    %v1081 = vsel %vm1080, 1, 0
    %v1082 = vadd.s32 %v1072, %v1076
    %v1083 = vadd.s32 %v1075, %v1081
    %vm1084 = vc.u32 %v1082, %v1078
    %v1085 = vsel %vm1084, 1, 0
    %v1086 = vadd.s32 %v1082, %v1078
    %v1087 = vadd.s32 %v1083, %v1085
    %v1088 = vadd.s32 %v1087, %v1077
    %v1089 = vadd.s32 %v1088, %v1079
    %v1090 = vmul.u32 %v1045, %v1036
    %v1091 = vadd.s32 %v1067, %v1086
    %vm1092 = vc.u32 %v1067, %v1086
    %v1093 = vadd.s32 %v1089, 1
    %v1094 = vsel %vm1092, %v1093, %v1089
    %v1095 = vadd.s32 %v1090, %v1094
    %v1096 = vadd.s32 %v1095, 536870912
    %v1097 = vshrl.u32 %v1096, 30
    %v1098 = vshll.u32 %v1097, 30
    %v1099 = vsub.s32 %v1095, %v1098
    %vm1100 = vcmp.lt.s32.totalorder %v1099, 0
    %v1101 = vsub.s32 0, %v1099
    %v1102 = vsel %vm1100, %v1101, %v1099
    %v1103 = vclz %v1102
    %v1104 = vsub.s32 %v1103, 2
    %vm1105 = vcmp.gt.s32.totalorder 0, %v1104
    %v1106 = vsel %vm1105, 0, %v1104
    %v1107 = vsub.s32 32, %v1106
    %v1108 = vshll.u32 %v1099, %v1106
    %v1109 = vshrl.u32 %v1091, %v1107
    %v1110 = vor.u32 %v1108, %v1109
    %v1111 = vsub.s32 4294967266, %v1106
    %v1112 = vadd.s32 %v1111, 127
    %v1113 = vshll.u32 %v1112, 23
    %v1114 = vor.u32 4788187, %v1113
    %v1115 = vand.u32 2147483647, %v1114
    %v1117 = vcvt.s32.f32 %v1110
    %v1118 = vmul.f32 %v1117, %v1115
    %v1119 = vxor.u32 %v1118, 2147483648
    %v1120 = vsel %vm999, %v1119, %v1118
    %v1121 = vsub.s32 4, %v1097
    %v1122 = vsel %vm999, %v1121, %v1097
    %v1123 = vsel %vm998, %v996, %v1120
    %v1124 = vsel %vm998, 0, %v1122
    %v1125 = vmul.f32 %v1123, %v1123
    %v1126 = vmul.f32 %v1125, -0.001358992
    %v1127 = vadd.f32 %v1126, 0.041655596
    %v1128 = vmul.f32 %v1125, %v1127
    %v1129 = vadd.f32 %v1128, -0.4999988
    %v1130 = vmul.f32 %v1125, %v1129
    %v1131 = vadd.f32 1.0, %v1130
    %v1132 = vmul.f32 %v1123, %v1123
    %v1133 = vmul.f32 %v1132, -0.00019511016
    %v1134 = vadd.f32 %v1133, 0.008332121
    %v1135 = vmul.f32 %v1132, %v1134
    %v1136 = vadd.f32 %v1135, -0.16666654
    %v1137 = vmul.f32 %v1132, %v1136
    %v1138 = vadd.f32 %v1137, 1.0
    %v1139 = vmul.f32 %v1138, %v1123
    %vm1140 = vweird.f32 %v996
    %v1141 = vand.u32 %v1124, 3
    %vm1142 = vcmp.lt.s32.totalorder %v1141, 2
    %vm1143 = vcmp.eq.s32.totalorder %v1141, 0
    %v1144 = vxor.u32 %v1139, 2147483648
    %v1145 = vsel %vm1143, %v1131, %v1144
    %vm1146 = vcmp.eq.s32.totalorder %v1141, 2
    %v1147 = vxor.u32 %v1131, 2147483648
    %v1148 = vsel %vm1146, %v1147, %v1139
    %v1149 = vsel %vm1142, %v1145, %v1148
    %v1150 = vsel %vm1140, nan, %v1149
    %v1151 = vstv %s990
    %v1152 = vmul.f32 %v1151, %v1150
    %v1153 = vmul.f32 %v993, %v35
    %v1154 = vmul.f32 %v1153, 1.442695
    %v1155 = vpow.pop %v1154
    %v1156 = vrcp.pop %v1155
    %v1157 = vmul.f32 %v1155, %v1156
    %v1158 = vsub.f32 1.0, %v1157
    %v1159 = vmul.f32 %v1156, %v1158
    %v1160 = vadd.f32 %v1156, %v1159
    %vm1161 = vweird.f32 %v1155
    %vm1162 = vweird.f32 %v1156
    %vm1163 = vmor %vm1161, %vm1162
    %v1164 = vsel %vm1163, %v1156, %v1160
    %v1165 = vand.u32 2147483647, %v1155
    %vm1166 = vcmp.eq.f32.partialorder %v1165, 8.507059e+37
    %v1167 = vand.u32 %v1155, 2147483648
    %v1168 = vor.u32 1.1754944e-38, %v1167
    %v1169 = vsel %vm1166, %v1168, %v1164
    %v1170 = vmul.f32 1.0, %v1169
    %v1171 = vstv %s991
    %v1172 = vmul.f32 %v1171, %v1155
    %v1173 = vstv %s992
    %v1174 = vmul.f32 %v1173, %v1170
    %v1175 = vadd.f32 %v1172, %v1174
    %v1176 = vmul.f32 %v1152, %v1175
    %v1177 = vadd.f32 %v987, %v1176
    %s1178 = sld [smem:[#allocation3 + $0x300]]
    %s1179 = sld [smem:[#allocation3 + $0x301]]
    %s1180 = sld [smem:[#allocation3 + $0x302]]
    %s1181 = sld [smem:[#allocation3 + $0x303]]
    %s1182 = sld [smem:[#allocation3 + $0x304]]
    %v1183 = vstv %s1178
    %v1184 = vmul.f32 %v1183, %v34
    %v1185 = vstv %s1179
    %v1186 = vsub.f32 %v1184, %v1185
    %v1187 = vand.u32 2147483647, %v1186
    %vm1188 = vcmp.le.f32.partialorder %v1187, 0.7853982
    %vm1189 = vcmp.lt.s32.totalorder %v1186, 0
    %v1190 = vand.u32 %v1186, 2139095040
    %v1191 = vshrl.u32 %v1190, 23
    %v1192 = vsub.s32 %v1191, 127
    %v1193 = vand.u32 2147483647, %v1186
    %v1194 = vand.u32 %v1193, 8388607
    %v1195 = vor.u32 %v1194, 8388608
    %v1196 = vsub.s32 0, %v1195
    %v1197 = vadd.s32 %v1192, 1
    %vm1198 = vcmp.gt.s32.totalorder %v1197, 0
    %v1199 = vsel %vm1198, %v1197, 0
    %v1200 = vshrl.u32 %v1199, 5
    %v1201 = vand.u32 %v1199, 31
    %v1202 = vsub.s32 32, %v1201
    %v1203 = vshrl.u32 683565275, %v1202
    %v1204 = vshll.u32 683565275, %v1201
    %v1205 = vshrl.u32 2475754826, %v1202
    %v1206 = vor.u32 %v1204, %v1205
    %v1207 = vshll.u32 2475754826, %v1201
    %v1208 = vshrl.u32 2131351028, %v1202
    %v1209 = vor.u32 %v1207, %v1208
    %v1210 = vshll.u32 2131351028, %v1201
    %v1211 = vshrl.u32 2102212464, %v1202
    %v1212 = vor.u32 %v1210, %v1211
    %v1213 = vshll.u32 2102212464, %v1201
    %v1214 = vshrl.u32 920167782, %v1202
    %v1215 = vor.u32 %v1213, %v1214
    %v1216 = vshll.u32 920167782, %v1201
    %v1217 = vshrl.u32 1326507024, %v1202
    %v1218 = vor.u32 %v1216, %v1217
    %vm1219 = vcmp.lt.s32.totalorder %v1200, 1
    %vm1220 = vcmp.lt.s32.totalorder %v1200, 2
    %vm1221 = vcmp.lt.s32.totalorder %v1200, 3
    %vm1222 = vcmp.lt.s32.totalorder %v1200, 4
    %v1223 = vsel %vm1219, %v1203, %v1206
    %v1224 = vsel %vm1222, %v1212, 2102212464
    %v1225 = vsel %vm1221, %v1209, %v1224
    %v1226 = vsel %vm1220, %v1223, %v1225
    %v1227 = vsel %vm1219, %v1206, %v1209
    %v1228 = vsel %vm1222, %v1215, 920167782
    %v1229 = vsel %vm1221, %v1212, %v1228
    %v1230 = vsel %vm1220, %v1227, %v1229
    %v1231 = vsel %vm1219, %v1209, %v1212
    %v1232 = vsel %vm1222, %v1218, 1326507024
    %v1233 = vsel %vm1221, %v1215, %v1232
    %v1234 = vsel %vm1220, %v1231, %v1233
    %v1235 = vshll.u32 %v1195, 8
    %v1236 = vand.u32 %v1235, 65535
    %v1237 = vshrl.u32 %v1235, 16
    %v1238 = vand.u32 %v1234, 65535
    %v1239 = vshrl.u32 %v1234, 16
    %v1240 = vmul.u32 %v1236, %v1238
    %v1241 = vmul.u32 %v1236, %v1239
    %v1242 = vmul.u32 %v1237, %v1238
    %v1243 = vmul.u32 %v1237, %v1239
    %v1244 = vshll.u32 %v1241, 16
    %v1245 = vshrl.u32 %v1241, 16
    %v1246 = vshll.u32 %v1242, 16
    %v1247 = vshrl.u32 %v1242, 16
    %vm1248 = vc.u32 %v1240, %v1244
    %v1249 = vsel %vm1248, 1, 0
    %v1250 = vadd.s32 %v1240, %v1244
    %v1251 = vadd.s32 %v1243, %v1249
    %vm1252 = vc.u32 %v1250, %v1246
    %v1253 = vsel %vm1252, 1, 0
    %v1254 = vadd.s32 %v1250, %v1246
    %v1255 = vadd.s32 %v1251, %v1253
    %v1256 = vadd.s32 %v1255, %v1245
    %v1257 = vadd.s32 %v1256, %v1247
    %v1258 = vand.u32 %v1235, 65535
    %v1259 = vshrl.u32 %v1235, 16
    %v1260 = vand.u32 %v1230, 65535
    %v1261 = vshrl.u32 %v1230, 16
    %v1262 = vmul.u32 %v1258, %v1260
    %v1263 = vmul.u32 %v1258, %v1261
    %v1264 = vmul.u32 %v1259, %v1260
    %v1265 = vmul.u32 %v1259, %v1261
    %v1266 = vshll.u32 %v1263, 16
    %v1267 = vshrl.u32 %v1263, 16
    %v1268 = vshll.u32 %v1264, 16
    %v1269 = vshrl.u32 %v1264, 16
    %vm1270 = vc.u32 %v1262, %v1266
    %v1271 = vsel %vm1270, 1, 0
    %v1272 = vadd.s32 %v1262, %v1266
    %v1273 = vadd.s32 %v1265, %v1271
    %vm1274 = vc.u32 %v1272, %v1268
    %v1275 = vsel %vm1274, 1, 0
    %v1276 = vadd.s32 %v1272, %v1268
    %v1277 = vadd.s32 %v1273, %v1275
    %v1278 = vadd.s32 %v1277, %v1267
    %v1279 = vadd.s32 %v1278, %v1269
    %v1280 = vmul.u32 %v1235, %v1226
    %v1281 = vadd.s32 %v1257, %v1276
    %vm1282 = vc.u32 %v1257, %v1276
    %v1283 = vadd.s32 %v1279, 1
    %v1284 = vsel %vm1282, %v1283, %v1279
    %v1285 = vadd.s32 %v1280, %v1284
    %v1286 = vadd.s32 %v1285, 536870912
    %v1287 = vshrl.u32 %v1286, 30
    %v1288 = vshll.u32 %v1287, 30
    %v1289 = vsub.s32 %v1285, %v1288
    %vm1290 = vcmp.lt.s32.totalorder %v1289, 0
    %v1291 = vsub.s32 0, %v1289
    %v1292 = vsel %vm1290, %v1291, %v1289
    %v1293 = vclz %v1292
    %v1294 = vsub.s32 %v1293, 2
    %vm1295 = vcmp.gt.s32.totalorder 0, %v1294
    %v1296 = vsel %vm1295, 0, %v1294
    %v1297 = vsub.s32 32, %v1296
    %v1298 = vshll.u32 %v1289, %v1296
    %v1299 = vshrl.u32 %v1281, %v1297
    %v1300 = vor.u32 %v1298, %v1299
    %v1301 = vsub.s32 4294967266, %v1296
    %v1302 = vadd.s32 %v1301, 127
    %v1303 = vshll.u32 %v1302, 23
    %v1304 = vor.u32 4788187, %v1303
    %v1305 = vand.u32 2147483647, %v1304
    %v1307 = vcvt.s32.f32 %v1300
    %v1308 = vmul.f32 %v1307, %v1305
    %v1309 = vxor.u32 %v1308, 2147483648
    %v1310 = vsel %vm1189, %v1309, %v1308
    %v1311 = vsub.s32 4, %v1287
    %v1312 = vsel %vm1189, %v1311, %v1287
    %v1313 = vsel %vm1188, %v1186, %v1310
    %v1314 = vsel %vm1188, 0, %v1312
    %v1315 = vmul.f32 %v1313, %v1313
    %v1316 = vmul.f32 %v1315, -0.001358992
    %v1317 = vadd.f32 %v1316, 0.041655596
    %v1318 = vmul.f32 %v1315, %v1317
    %v1319 = vadd.f32 %v1318, -0.4999988
    %v1320 = vmul.f32 %v1315, %v1319
    %v1321 = vadd.f32 1.0, %v1320
    %v1322 = vmul.f32 %v1313, %v1313
    %v1323 = vmul.f32 %v1322, -0.00019511016
    %v1324 = vadd.f32 %v1323, 0.008332121
    %v1325 = vmul.f32 %v1322, %v1324
    %v1326 = vadd.f32 %v1325, -0.16666654
    %v1327 = vmul.f32 %v1322, %v1326
    %v1328 = vadd.f32 %v1327, 1.0
    %v1329 = vmul.f32 %v1328, %v1313
    %vm1330 = vweird.f32 %v1186
    %v1331 = vand.u32 %v1314, 3
    %vm1332 = vcmp.lt.s32.totalorder %v1331, 2
    %vm1333 = vcmp.eq.s32.totalorder %v1331, 0
    %v1334 = vxor.u32 %v1329, 2147483648
    %v1335 = vsel %vm1333, %v1321, %v1334
    %vm1336 = vcmp.eq.s32.totalorder %v1331, 2
    %v1337 = vxor.u32 %v1321, 2147483648
    %v1338 = vsel %vm1336, %v1337, %v1329
    %v1339 = vsel %vm1332, %v1335, %v1338
    %v1340 = vsel %vm1330, nan, %v1339
    %v1341 = vstv %s1180
    %v1342 = vmul.f32 %v1341, %v1340
    %v1343 = vmul.f32 %v1183, %v35
    %v1344 = vmul.f32 %v1343, 1.442695
    %v1345 = vpow.pop %v1344
    %v1346 = vrcp.pop %v1345
    %v1347 = vmul.f32 %v1345, %v1346
    %v1348 = vsub.f32 1.0, %v1347
    %v1349 = vmul.f32 %v1346, %v1348
    %v1350 = vadd.f32 %v1346, %v1349
    %vm1351 = vweird.f32 %v1345
    %vm1352 = vweird.f32 %v1346
    %vm1353 = vmor %vm1351, %vm1352
    %v1354 = vsel %vm1353, %v1346, %v1350
    %v1355 = vand.u32 2147483647, %v1345
    %vm1356 = vcmp.eq.f32.partialorder %v1355, 8.507059e+37
    %v1357 = vand.u32 %v1345, 2147483648
    %v1358 = vor.u32 1.1754944e-38, %v1357
    %v1359 = vsel %vm1356, %v1358, %v1354
    %v1360 = vmul.f32 1.0, %v1359
    %v1361 = vstv %s1181
    %v1362 = vmul.f32 %v1361, %v1345
    %v1363 = vstv %s1182
    %v1364 = vmul.f32 %v1363, %v1360
    %v1365 = vadd.f32 %v1362, %v1364
    %v1366 = vmul.f32 %v1342, %v1365
    %v1367 = vadd.f32 %v1177, %v1366
    %s1368 = sld [smem:[#allocation3 + $0x380]]
    %s1369 = sld [smem:[#allocation3 + $0x381]]
    %s1370 = sld [smem:[#allocation3 + $0x382]]
    %s1371 = sld [smem:[#allocation3 + $0x383]]
    %s1372 = sld [smem:[#allocation3 + $0x384]]
    %v1373 = vstv %s1368
    %v1374 = vmul.f32 %v1373, %v34
    %v1375 = vstv %s1369
    %v1376 = vsub.f32 %v1374, %v1375
    %v1377 = vand.u32 2147483647, %v1376
    %vm1378 = vcmp.le.f32.partialorder %v1377, 0.7853982
    %vm1379 = vcmp.lt.s32.totalorder %v1376, 0
    %v1380 = vand.u32 %v1376, 2139095040
    %v1381 = vshrl.u32 %v1380, 23
    %v1382 = vsub.s32 %v1381, 127
    %v1383 = vand.u32 2147483647, %v1376
    %v1384 = vand.u32 %v1383, 8388607
    %v1385 = vor.u32 %v1384, 8388608
    %v1386 = vsub.s32 0, %v1385
    %v1387 = vadd.s32 %v1382, 1
    %vm1388 = vcmp.gt.s32.totalorder %v1387, 0
    %v1389 = vsel %vm1388, %v1387, 0
    %v1390 = vshrl.u32 %v1389, 5
    %v1391 = vand.u32 %v1389, 31
    %v1392 = vsub.s32 32, %v1391
    %v1393 = vshrl.u32 683565275, %v1392
    %v1394 = vshll.u32 683565275, %v1391
    %v1395 = vshrl.u32 2475754826, %v1392
    %v1396 = vor.u32 %v1394, %v1395
    %v1397 = vshll.u32 2475754826, %v1391
    %v1398 = vshrl.u32 2131351028, %v1392
    %v1399 = vor.u32 %v1397, %v1398
    %v1400 = vshll.u32 2131351028, %v1391
    %v1401 = vshrl.u32 2102212464, %v1392
    %v1402 = vor.u32 %v1400, %v1401
    %v1403 = vshll.u32 2102212464, %v1391
    %v1404 = vshrl.u32 920167782, %v1392
    %v1405 = vor.u32 %v1403, %v1404
    %v1406 = vshll.u32 920167782, %v1391
    %v1407 = vshrl.u32 1326507024, %v1392
    %v1408 = vor.u32 %v1406, %v1407
    %vm1409 = vcmp.lt.s32.totalorder %v1390, 1
    %vm1410 = vcmp.lt.s32.totalorder %v1390, 2
    %vm1411 = vcmp.lt.s32.totalorder %v1390, 3
    %vm1412 = vcmp.lt.s32.totalorder %v1390, 4
    %v1413 = vsel %vm1409, %v1393, %v1396
    %v1414 = vsel %vm1412, %v1402, 2102212464
    %v1415 = vsel %vm1411, %v1399, %v1414
    %v1416 = vsel %vm1410, %v1413, %v1415
    %v1417 = vsel %vm1409, %v1396, %v1399
    %v1418 = vsel %vm1412, %v1405, 920167782
    %v1419 = vsel %vm1411, %v1402, %v1418
    %v1420 = vsel %vm1410, %v1417, %v1419
    %v1421 = vsel %vm1409, %v1399, %v1402
    %v1422 = vsel %vm1412, %v1408, 1326507024
    %v1423 = vsel %vm1411, %v1405, %v1422
    %v1424 = vsel %vm1410, %v1421, %v1423
    %v1425 = vshll.u32 %v1385, 8
    %v1426 = vand.u32 %v1425, 65535
    %v1427 = vshrl.u32 %v1425, 16
    %v1428 = vand.u32 %v1424, 65535
    %v1429 = vshrl.u32 %v1424, 16
    %v1430 = vmul.u32 %v1426, %v1428
    %v1431 = vmul.u32 %v1426, %v1429
    %v1432 = vmul.u32 %v1427, %v1428
    %v1433 = vmul.u32 %v1427, %v1429
    %v1434 = vshll.u32 %v1431, 16
    %v1435 = vshrl.u32 %v1431, 16
    %v1436 = vshll.u32 %v1432, 16
    %v1437 = vshrl.u32 %v1432, 16
    %vm1438 = vc.u32 %v1430, %v1434
    %v1439 = vsel %vm1438, 1, 0
    %v1440 = vadd.s32 %v1430, %v1434
    %v1441 = vadd.s32 %v1433, %v1439
    %vm1442 = vc.u32 %v1440, %v1436
    %v1443 = vsel %vm1442, 1, 0
    %v1444 = vadd.s32 %v1440, %v1436
    %v1445 = vadd.s32 %v1441, %v1443
    %v1446 = vadd.s32 %v1445, %v1435
    %v1447 = vadd.s32 %v1446, %v1437
    %v1448 = vand.u32 %v1425, 65535
    %v1449 = vshrl.u32 %v1425, 16
    %v1450 = vand.u32 %v1420, 65535
    %v1451 = vshrl.u32 %v1420, 16
    %v1452 = vmul.u32 %v1448, %v1450
    %v1453 = vmul.u32 %v1448, %v1451
    %v1454 = vmul.u32 %v1449, %v1450
    %v1455 = vmul.u32 %v1449, %v1451
    %v1456 = vshll.u32 %v1453, 16
    %v1457 = vshrl.u32 %v1453, 16
    %v1458 = vshll.u32 %v1454, 16
    %v1459 = vshrl.u32 %v1454, 16
    %vm1460 = vc.u32 %v1452, %v1456
    %v1461 = vsel %vm1460, 1, 0
    %v1462 = vadd.s32 %v1452, %v1456
    %v1463 = vadd.s32 %v1455, %v1461
    %vm1464 = vc.u32 %v1462, %v1458
    %v1465 = vsel %vm1464, 1, 0
    %v1466 = vadd.s32 %v1462, %v1458
    %v1467 = vadd.s32 %v1463, %v1465
    %v1468 = vadd.s32 %v1467, %v1457
    %v1469 = vadd.s32 %v1468, %v1459
    %v1470 = vmul.u32 %v1425, %v1416
    %v1471 = vadd.s32 %v1447, %v1466
    %vm1472 = vc.u32 %v1447, %v1466
    %v1473 = vadd.s32 %v1469, 1
    %v1474 = vsel %vm1472, %v1473, %v1469
    %v1475 = vadd.s32 %v1470, %v1474
    %v1476 = vadd.s32 %v1475, 536870912
    %v1477 = vshrl.u32 %v1476, 30
    %v1478 = vshll.u32 %v1477, 30
    %v1479 = vsub.s32 %v1475, %v1478
    %vm1480 = vcmp.lt.s32.totalorder %v1479, 0
    %v1481 = vsub.s32 0, %v1479
    %v1482 = vsel %vm1480, %v1481, %v1479
    %v1483 = vclz %v1482
    %v1484 = vsub.s32 %v1483, 2
    %vm1485 = vcmp.gt.s32.totalorder 0, %v1484
    %v1486 = vsel %vm1485, 0, %v1484
    %v1487 = vsub.s32 32, %v1486
    %v1488 = vshll.u32 %v1479, %v1486
    %v1489 = vshrl.u32 %v1471, %v1487
    %v1490 = vor.u32 %v1488, %v1489
    %v1491 = vsub.s32 4294967266, %v1486
    %v1492 = vadd.s32 %v1491, 127
    %v1493 = vshll.u32 %v1492, 23
    %v1494 = vor.u32 4788187, %v1493
    %v1495 = vand.u32 2147483647, %v1494
    %v1497 = vcvt.s32.f32 %v1490
    %v1498 = vmul.f32 %v1497, %v1495
    %v1499 = vxor.u32 %v1498, 2147483648
    %v1500 = vsel %vm1379, %v1499, %v1498
    %v1501 = vsub.s32 4, %v1477
    %v1502 = vsel %vm1379, %v1501, %v1477
    %v1503 = vsel %vm1378, %v1376, %v1500
    %v1504 = vsel %vm1378, 0, %v1502
    %v1505 = vmul.f32 %v1503, %v1503
    %v1506 = vmul.f32 %v1505, -0.001358992
    %v1507 = vadd.f32 %v1506, 0.041655596
    %v1508 = vmul.f32 %v1505, %v1507
    %v1509 = vadd.f32 %v1508, -0.4999988
    %v1510 = vmul.f32 %v1505, %v1509
    %v1511 = vadd.f32 1.0, %v1510
    %v1512 = vmul.f32 %v1503, %v1503
    %v1513 = vmul.f32 %v1512, -0.00019511016
    %v1514 = vadd.f32 %v1513, 0.008332121
    %v1515 = vmul.f32 %v1512, %v1514
    %v1516 = vadd.f32 %v1515, -0.16666654
    %v1517 = vmul.f32 %v1512, %v1516
    %v1518 = vadd.f32 %v1517, 1.0
    %v1519 = vmul.f32 %v1518, %v1503
    %vm1520 = vweird.f32 %v1376
    %v1521 = vand.u32 %v1504, 3
    %vm1522 = vcmp.lt.s32.totalorder %v1521, 2
    %vm1523 = vcmp.eq.s32.totalorder %v1521, 0
    %v1524 = vxor.u32 %v1519, 2147483648
    %v1525 = vsel %vm1523, %v1511, %v1524
    %vm1526 = vcmp.eq.s32.totalorder %v1521, 2
    %v1527 = vxor.u32 %v1511, 2147483648
    %v1528 = vsel %vm1526, %v1527, %v1519
    %v1529 = vsel %vm1522, %v1525, %v1528
    %v1530 = vsel %vm1520, nan, %v1529
    %v1531 = vstv %s1370
    %v1532 = vmul.f32 %v1531, %v1530
    %v1533 = vmul.f32 %v1373, %v35
    %v1534 = vmul.f32 %v1533, 1.442695
    %v1535 = vpow.pop %v1534
    %v1536 = vrcp.pop %v1535
    %v1537 = vmul.f32 %v1535, %v1536
    %v1538 = vsub.f32 1.0, %v1537
    %v1539 = vmul.f32 %v1536, %v1538
    %v1540 = vadd.f32 %v1536, %v1539
    %vm1541 = vweird.f32 %v1535
    %vm1542 = vweird.f32 %v1536
    %vm1543 = vmor %vm1541, %vm1542
    %v1544 = vsel %vm1543, %v1536, %v1540
    %v1545 = vand.u32 2147483647, %v1535
    %vm1546 = vcmp.eq.f32.partialorder %v1545, 8.507059e+37
    %v1547 = vand.u32 %v1535, 2147483648
    %v1548 = vor.u32 1.1754944e-38, %v1547
    %v1549 = vsel %vm1546, %v1548, %v1544
    %v1550 = vmul.f32 1.0, %v1549
    %v1551 = vstv %s1371
    %v1552 = vmul.f32 %v1551, %v1535
    %v1553 = vstv %s1372
    %v1554 = vmul.f32 %v1553, %v1550
    %v1555 = vadd.f32 %v1552, %v1554
    %v1556 = vmul.f32 %v1532, %v1555
    %v1557 = vadd.f32 %v1367, %v1556
    %s1558 = sld [smem:[#allocation3 + $0x400]]
    %s1559 = sld [smem:[#allocation3 + $0x401]]
    %s1560 = sld [smem:[#allocation3 + $0x402]]
    %s1561 = sld [smem:[#allocation3 + $0x403]]
    %s1562 = sld [smem:[#allocation3 + $0x404]]
    %v1563 = vstv %s1558
    %v1564 = vmul.f32 %v1563, %v34
    %v1565 = vstv %s1559
    %v1566 = vsub.f32 %v1564, %v1565
    %v1567 = vand.u32 2147483647, %v1566
    %vm1568 = vcmp.le.f32.partialorder %v1567, 0.7853982
    %vm1569 = vcmp.lt.s32.totalorder %v1566, 0
    %v1570 = vand.u32 %v1566, 2139095040
    %v1571 = vshrl.u32 %v1570, 23
    %v1572 = vsub.s32 %v1571, 127
    %v1573 = vand.u32 2147483647, %v1566
    %v1574 = vand.u32 %v1573, 8388607
    %v1575 = vor.u32 %v1574, 8388608
    %v1576 = vsub.s32 0, %v1575
    %v1577 = vadd.s32 %v1572, 1
    %vm1578 = vcmp.gt.s32.totalorder %v1577, 0
    %v1579 = vsel %vm1578, %v1577, 0
    %v1580 = vshrl.u32 %v1579, 5
    %v1581 = vand.u32 %v1579, 31
    %v1582 = vsub.s32 32, %v1581
    %v1583 = vshrl.u32 683565275, %v1582
    %v1584 = vshll.u32 683565275, %v1581
    %v1585 = vshrl.u32 2475754826, %v1582
    %v1586 = vor.u32 %v1584, %v1585
    %v1587 = vshll.u32 2475754826, %v1581
    %v1588 = vshrl.u32 2131351028, %v1582
    %v1589 = vor.u32 %v1587, %v1588
    %v1590 = vshll.u32 2131351028, %v1581
    %v1591 = vshrl.u32 2102212464, %v1582
    %v1592 = vor.u32 %v1590, %v1591
    %v1593 = vshll.u32 2102212464, %v1581
    %v1594 = vshrl.u32 920167782, %v1582
    %v1595 = vor.u32 %v1593, %v1594
    %v1596 = vshll.u32 920167782, %v1581
    %v1597 = vshrl.u32 1326507024, %v1582
    %v1598 = vor.u32 %v1596, %v1597
    %vm1599 = vcmp.lt.s32.totalorder %v1580, 1
    %vm1600 = vcmp.lt.s32.totalorder %v1580, 2
    %vm1601 = vcmp.lt.s32.totalorder %v1580, 3
    %vm1602 = vcmp.lt.s32.totalorder %v1580, 4
    %v1603 = vsel %vm1599, %v1583, %v1586
    %v1604 = vsel %vm1602, %v1592, 2102212464
    %v1605 = vsel %vm1601, %v1589, %v1604
    %v1606 = vsel %vm1600, %v1603, %v1605
    %v1607 = vsel %vm1599, %v1586, %v1589
    %v1608 = vsel %vm1602, %v1595, 920167782
    %v1609 = vsel %vm1601, %v1592, %v1608
    %v1610 = vsel %vm1600, %v1607, %v1609
    %v1611 = vsel %vm1599, %v1589, %v1592
    %v1612 = vsel %vm1602, %v1598, 1326507024
    %v1613 = vsel %vm1601, %v1595, %v1612
    %v1614 = vsel %vm1600, %v1611, %v1613
    %v1615 = vshll.u32 %v1575, 8
    %v1616 = vand.u32 %v1615, 65535
    %v1617 = vshrl.u32 %v1615, 16
    %v1618 = vand.u32 %v1614, 65535
    %v1619 = vshrl.u32 %v1614, 16
    %v1620 = vmul.u32 %v1616, %v1618
    %v1621 = vmul.u32 %v1616, %v1619
    %v1622 = vmul.u32 %v1617, %v1618
    %v1623 = vmul.u32 %v1617, %v1619
    %v1624 = vshll.u32 %v1621, 16
    %v1625 = vshrl.u32 %v1621, 16
    %v1626 = vshll.u32 %v1622, 16
    %v1627 = vshrl.u32 %v1622, 16
    %vm1628 = vc.u32 %v1620, %v1624
    %v1629 = vsel %vm1628, 1, 0
    %v1630 = vadd.s32 %v1620, %v1624
    %v1631 = vadd.s32 %v1623, %v1629
    %vm1632 = vc.u32 %v1630, %v1626
    %v1633 = vsel %vm1632, 1, 0
    %v1634 = vadd.s32 %v1630, %v1626
    %v1635 = vadd.s32 %v1631, %v1633
    %v1636 = vadd.s32 %v1635, %v1625
    %v1637 = vadd.s32 %v1636, %v1627
    %v1638 = vand.u32 %v1615, 65535
    %v1639 = vshrl.u32 %v1615, 16
    %v1640 = vand.u32 %v1610, 65535
    %v1641 = vshrl.u32 %v1610, 16
    %v1642 = vmul.u32 %v1638, %v1640
    %v1643 = vmul.u32 %v1638, %v1641
    %v1644 = vmul.u32 %v1639, %v1640
    %v1645 = vmul.u32 %v1639, %v1641
    %v1646 = vshll.u32 %v1643, 16
    %v1647 = vshrl.u32 %v1643, 16
    %v1648 = vshll.u32 %v1644, 16
    %v1649 = vshrl.u32 %v1644, 16
    %vm1650 = vc.u32 %v1642, %v1646
    %v1651 = vsel %vm1650, 1, 0
    %v1652 = vadd.s32 %v1642, %v1646
    %v1653 = vadd.s32 %v1645, %v1651
    %vm1654 = vc.u32 %v1652, %v1648
    %v1655 = vsel %vm1654, 1, 0
    %v1656 = vadd.s32 %v1652, %v1648
    %v1657 = vadd.s32 %v1653, %v1655
    %v1658 = vadd.s32 %v1657, %v1647
    %v1659 = vadd.s32 %v1658, %v1649
    %v1660 = vmul.u32 %v1615, %v1606
    %v1661 = vadd.s32 %v1637, %v1656
    %vm1662 = vc.u32 %v1637, %v1656
    %v1663 = vadd.s32 %v1659, 1
    %v1664 = vsel %vm1662, %v1663, %v1659
    %v1665 = vadd.s32 %v1660, %v1664
    %v1666 = vadd.s32 %v1665, 536870912
    %v1667 = vshrl.u32 %v1666, 30
    %v1668 = vshll.u32 %v1667, 30
    %v1669 = vsub.s32 %v1665, %v1668
    %vm1670 = vcmp.lt.s32.totalorder %v1669, 0
    %v1671 = vsub.s32 0, %v1669
    %v1672 = vsel %vm1670, %v1671, %v1669
    %v1673 = vclz %v1672
    %v1674 = vsub.s32 %v1673, 2
    %vm1675 = vcmp.gt.s32.totalorder 0, %v1674
    %v1676 = vsel %vm1675, 0, %v1674
    %v1677 = vsub.s32 32, %v1676
    %v1678 = vshll.u32 %v1669, %v1676
    %v1679 = vshrl.u32 %v1661, %v1677
    %v1680 = vor.u32 %v1678, %v1679
    %v1681 = vsub.s32 4294967266, %v1676
    %v1682 = vadd.s32 %v1681, 127
    %v1683 = vshll.u32 %v1682, 23
    %v1684 = vor.u32 4788187, %v1683
    %v1685 = vand.u32 2147483647, %v1684
    %v1687 = vcvt.s32.f32 %v1680
    %v1688 = vmul.f32 %v1687, %v1685
    %v1689 = vxor.u32 %v1688, 2147483648
    %v1690 = vsel %vm1569, %v1689, %v1688
    %v1691 = vsub.s32 4, %v1667
    %v1692 = vsel %vm1569, %v1691, %v1667
    %v1693 = vsel %vm1568, %v1566, %v1690
    %v1694 = vsel %vm1568, 0, %v1692
    %v1695 = vmul.f32 %v1693, %v1693
    %v1696 = vmul.f32 %v1695, -0.001358992
    %v1697 = vadd.f32 %v1696, 0.041655596
    %v1698 = vmul.f32 %v1695, %v1697
    %v1699 = vadd.f32 %v1698, -0.4999988
    %v1700 = vmul.f32 %v1695, %v1699
    %v1701 = vadd.f32 1.0, %v1700
    %v1702 = vmul.f32 %v1693, %v1693
    %v1703 = vmul.f32 %v1702, -0.00019511016
    %v1704 = vadd.f32 %v1703, 0.008332121
    %v1705 = vmul.f32 %v1702, %v1704
    %v1706 = vadd.f32 %v1705, -0.16666654
    %v1707 = vmul.f32 %v1702, %v1706
    %v1708 = vadd.f32 %v1707, 1.0
    %v1709 = vmul.f32 %v1708, %v1693
    %vm1710 = vweird.f32 %v1566
    %v1711 = vand.u32 %v1694, 3
    %vm1712 = vcmp.lt.s32.totalorder %v1711, 2
    %vm1713 = vcmp.eq.s32.totalorder %v1711, 0
    %v1714 = vxor.u32 %v1709, 2147483648
    %v1715 = vsel %vm1713, %v1701, %v1714
    %vm1716 = vcmp.eq.s32.totalorder %v1711, 2
    %v1717 = vxor.u32 %v1701, 2147483648
    %v1718 = vsel %vm1716, %v1717, %v1709
    %v1719 = vsel %vm1712, %v1715, %v1718
    %v1720 = vsel %vm1710, nan, %v1719
    %v1721 = vstv %s1560
    %v1722 = vmul.f32 %v1721, %v1720
    %v1723 = vmul.f32 %v1563, %v35
    %v1724 = vmul.f32 %v1723, 1.442695
    %v1725 = vpow.pop %v1724
    %v1726 = vrcp.pop %v1725
    %v1727 = vmul.f32 %v1725, %v1726
    %v1728 = vsub.f32 1.0, %v1727
    %v1729 = vmul.f32 %v1726, %v1728
    %v1730 = vadd.f32 %v1726, %v1729
    %vm1731 = vweird.f32 %v1725
    %vm1732 = vweird.f32 %v1726
    %vm1733 = vmor %vm1731, %vm1732
    %v1734 = vsel %vm1733, %v1726, %v1730
    %v1735 = vand.u32 2147483647, %v1725
    %vm1736 = vcmp.eq.f32.partialorder %v1735, 8.507059e+37
    %v1737 = vand.u32 %v1725, 2147483648
    %v1738 = vor.u32 1.1754944e-38, %v1737
    %v1739 = vsel %vm1736, %v1738, %v1734
    %v1740 = vmul.f32 1.0, %v1739
    %v1741 = vstv %s1561
    %v1742 = vmul.f32 %v1741, %v1725
    %v1743 = vstv %s1562
    %v1744 = vmul.f32 %v1743, %v1740
    %v1745 = vadd.f32 %v1742, %v1744
    %v1746 = vmul.f32 %v1722, %v1745
    %v1747 = vadd.f32 %v1557, %v1746
    %s1748 = sld [smem:[#allocation3 + $0x480]]
    %s1749 = sld [smem:[#allocation3 + $0x481]]
    %s1750 = sld [smem:[#allocation3 + $0x482]]
    %s1751 = sld [smem:[#allocation3 + $0x483]]
    %s1752 = sld [smem:[#allocation3 + $0x484]]
    %v1753 = vstv %s1748
    %v1754 = vmul.f32 %v1753, %v34
    %v1755 = vstv %s1749
    %v1756 = vsub.f32 %v1754, %v1755
    %v1757 = vand.u32 2147483647, %v1756
    %vm1758 = vcmp.le.f32.partialorder %v1757, 0.7853982
    %vm1759 = vcmp.lt.s32.totalorder %v1756, 0
    %v1760 = vand.u32 %v1756, 2139095040
    %v1761 = vshrl.u32 %v1760, 23
    %v1762 = vsub.s32 %v1761, 127
    %v1763 = vand.u32 2147483647, %v1756
    %v1764 = vand.u32 %v1763, 8388607
    %v1765 = vor.u32 %v1764, 8388608
    %v1766 = vsub.s32 0, %v1765
    %v1767 = vadd.s32 %v1762, 1
    %vm1768 = vcmp.gt.s32.totalorder %v1767, 0
    %v1769 = vsel %vm1768, %v1767, 0
    %v1770 = vshrl.u32 %v1769, 5
    %v1771 = vand.u32 %v1769, 31
    %v1772 = vsub.s32 32, %v1771
    %v1773 = vshrl.u32 683565275, %v1772
    %v1774 = vshll.u32 683565275, %v1771
    %v1775 = vshrl.u32 2475754826, %v1772
    %v1776 = vor.u32 %v1774, %v1775
    %v1777 = vshll.u32 2475754826, %v1771
    %v1778 = vshrl.u32 2131351028, %v1772
    %v1779 = vor.u32 %v1777, %v1778
    %v1780 = vshll.u32 2131351028, %v1771
    %v1781 = vshrl.u32 2102212464, %v1772
    %v1782 = vor.u32 %v1780, %v1781
    %v1783 = vshll.u32 2102212464, %v1771
    %v1784 = vshrl.u32 920167782, %v1772
    %v1785 = vor.u32 %v1783, %v1784
    %v1786 = vshll.u32 920167782, %v1771
    %v1787 = vshrl.u32 1326507024, %v1772
    %v1788 = vor.u32 %v1786, %v1787
    %vm1789 = vcmp.lt.s32.totalorder %v1770, 1
    %vm1790 = vcmp.lt.s32.totalorder %v1770, 2
    %vm1791 = vcmp.lt.s32.totalorder %v1770, 3
    %vm1792 = vcmp.lt.s32.totalorder %v1770, 4
    %v1793 = vsel %vm1789, %v1773, %v1776
    %v1794 = vsel %vm1792, %v1782, 2102212464
    %v1795 = vsel %vm1791, %v1779, %v1794
    %v1796 = vsel %vm1790, %v1793, %v1795
    %v1797 = vsel %vm1789, %v1776, %v1779
    %v1798 = vsel %vm1792, %v1785, 920167782
    %v1799 = vsel %vm1791, %v1782, %v1798
    %v1800 = vsel %vm1790, %v1797, %v1799
    %v1801 = vsel %vm1789, %v1779, %v1782
    %v1802 = vsel %vm1792, %v1788, 1326507024
    %v1803 = vsel %vm1791, %v1785, %v1802
    %v1804 = vsel %vm1790, %v1801, %v1803
    %v1805 = vshll.u32 %v1765, 8
    %v1806 = vand.u32 %v1805, 65535
    %v1807 = vshrl.u32 %v1805, 16
    %v1808 = vand.u32 %v1804, 65535
    %v1809 = vshrl.u32 %v1804, 16
    %v1810 = vmul.u32 %v1806, %v1808
    %v1811 = vmul.u32 %v1806, %v1809
    %v1812 = vmul.u32 %v1807, %v1808
    %v1813 = vmul.u32 %v1807, %v1809
    %v1814 = vshll.u32 %v1811, 16
    %v1815 = vshrl.u32 %v1811, 16
    %v1816 = vshll.u32 %v1812, 16
    %v1817 = vshrl.u32 %v1812, 16
    %vm1818 = vc.u32 %v1810, %v1814
    %v1819 = vsel %vm1818, 1, 0
    %v1820 = vadd.s32 %v1810, %v1814
    %v1821 = vadd.s32 %v1813, %v1819
    %vm1822 = vc.u32 %v1820, %v1816
    %v1823 = vsel %vm1822, 1, 0
    %v1824 = vadd.s32 %v1820, %v1816
    %v1825 = vadd.s32 %v1821, %v1823
    %v1826 = vadd.s32 %v1825, %v1815
    %v1827 = vadd.s32 %v1826, %v1817
    %v1828 = vand.u32 %v1805, 65535
    %v1829 = vshrl.u32 %v1805, 16
    %v1830 = vand.u32 %v1800, 65535
    %v1831 = vshrl.u32 %v1800, 16
    %v1832 = vmul.u32 %v1828, %v1830
    %v1833 = vmul.u32 %v1828, %v1831
    %v1834 = vmul.u32 %v1829, %v1830
    %v1835 = vmul.u32 %v1829, %v1831
    %v1836 = vshll.u32 %v1833, 16
    %v1837 = vshrl.u32 %v1833, 16
    %v1838 = vshll.u32 %v1834, 16
    %v1839 = vshrl.u32 %v1834, 16
    %vm1840 = vc.u32 %v1832, %v1836
    %v1841 = vsel %vm1840, 1, 0
    %v1842 = vadd.s32 %v1832, %v1836
    %v1843 = vadd.s32 %v1835, %v1841
    %vm1844 = vc.u32 %v1842, %v1838
    %v1845 = vsel %vm1844, 1, 0
    %v1846 = vadd.s32 %v1842, %v1838
    %v1847 = vadd.s32 %v1843, %v1845
    %v1848 = vadd.s32 %v1847, %v1837
    %v1849 = vadd.s32 %v1848, %v1839
    %v1850 = vmul.u32 %v1805, %v1796
    %v1851 = vadd.s32 %v1827, %v1846
    %vm1852 = vc.u32 %v1827, %v1846
    %v1853 = vadd.s32 %v1849, 1
    %v1854 = vsel %vm1852, %v1853, %v1849
    %v1855 = vadd.s32 %v1850, %v1854
    %v1856 = vadd.s32 %v1855, 536870912
    %v1857 = vshrl.u32 %v1856, 30
    %v1858 = vshll.u32 %v1857, 30
    %v1859 = vsub.s32 %v1855, %v1858
    %vm1860 = vcmp.lt.s32.totalorder %v1859, 0
    %v1861 = vsub.s32 0, %v1859
    %v1862 = vsel %vm1860, %v1861, %v1859
    %v1863 = vclz %v1862
    %v1864 = vsub.s32 %v1863, 2
    %vm1865 = vcmp.gt.s32.totalorder 0, %v1864
    %v1866 = vsel %vm1865, 0, %v1864
    %v1867 = vsub.s32 32, %v1866
    %v1868 = vshll.u32 %v1859, %v1866
    %v1869 = vshrl.u32 %v1851, %v1867
    %v1870 = vor.u32 %v1868, %v1869
    %v1871 = vsub.s32 4294967266, %v1866
    %v1872 = vadd.s32 %v1871, 127
    %v1873 = vshll.u32 %v1872, 23
    %v1874 = vor.u32 4788187, %v1873
    %v1875 = vand.u32 2147483647, %v1874
    %v1877 = vcvt.s32.f32 %v1870
    %v1878 = vmul.f32 %v1877, %v1875
    %v1879 = vxor.u32 %v1878, 2147483648
    %v1880 = vsel %vm1759, %v1879, %v1878
    %v1881 = vsub.s32 4, %v1857
    %v1882 = vsel %vm1759, %v1881, %v1857
    %v1883 = vsel %vm1758, %v1756, %v1880
    %v1884 = vsel %vm1758, 0, %v1882
    %v1885 = vmul.f32 %v1883, %v1883
    %v1886 = vmul.f32 %v1885, -0.001358992
    %v1887 = vadd.f32 %v1886, 0.041655596
    %v1888 = vmul.f32 %v1885, %v1887
    %v1889 = vadd.f32 %v1888, -0.4999988
    %v1890 = vmul.f32 %v1885, %v1889
    %v1891 = vadd.f32 1.0, %v1890
    %v1892 = vmul.f32 %v1883, %v1883
    %v1893 = vmul.f32 %v1892, -0.00019511016
    %v1894 = vadd.f32 %v1893, 0.008332121
    %v1895 = vmul.f32 %v1892, %v1894
    %v1896 = vadd.f32 %v1895, -0.16666654
    %v1897 = vmul.f32 %v1892, %v1896
    %v1898 = vadd.f32 %v1897, 1.0
    %v1899 = vmul.f32 %v1898, %v1883
    %vm1900 = vweird.f32 %v1756
    %v1901 = vand.u32 %v1884, 3
    %vm1902 = vcmp.lt.s32.totalorder %v1901, 2
    %vm1903 = vcmp.eq.s32.totalorder %v1901, 0
    %v1904 = vxor.u32 %v1899, 2147483648
    %v1905 = vsel %vm1903, %v1891, %v1904
    %vm1906 = vcmp.eq.s32.totalorder %v1901, 2
    %v1907 = vxor.u32 %v1891, 2147483648
    %v1908 = vsel %vm1906, %v1907, %v1899
    %v1909 = vsel %vm1902, %v1905, %v1908
    %v1910 = vsel %vm1900, nan, %v1909
    %v1911 = vstv %s1750
    %v1912 = vmul.f32 %v1911, %v1910
    %v1913 = vmul.f32 %v1753, %v35
    %v1914 = vmul.f32 %v1913, 1.442695
    %v1915 = vpow.pop %v1914
    %v1916 = vrcp.pop %v1915
    %v1917 = vmul.f32 %v1915, %v1916
    %v1918 = vsub.f32 1.0, %v1917
    %v1919 = vmul.f32 %v1916, %v1918
    %v1920 = vadd.f32 %v1916, %v1919
    %vm1921 = vweird.f32 %v1915
    %vm1922 = vweird.f32 %v1916
    %vm1923 = vmor %vm1921, %vm1922
    %v1924 = vsel %vm1923, %v1916, %v1920
    %v1925 = vand.u32 2147483647, %v1915
    %vm1926 = vcmp.eq.f32.partialorder %v1925, 8.507059e+37
    %v1927 = vand.u32 %v1915, 2147483648
    %v1928 = vor.u32 1.1754944e-38, %v1927
    %v1929 = vsel %vm1926, %v1928, %v1924
    %v1930 = vmul.f32 1.0, %v1929
    %v1931 = vstv %s1751
    %v1932 = vmul.f32 %v1931, %v1915
    %v1933 = vstv %s1752
    %v1934 = vmul.f32 %v1933, %v1930
    %v1935 = vadd.f32 %v1932, %v1934
    %v1936 = vmul.f32 %v1912, %v1935
    %v1937 = vadd.f32 %v1747, %v1936
    %1938 = vst [vmem:[#allocation6] sm:$0xff] %v1937
    // Predicated region
    $region22: #{tpu_custom_call.1} parent=1 // pred_check
      _
    $region23: #{tpu_custom_call.1} parent=1 // pred_check_branch
      %1940 = sbr.rel (0) target = $region25
    $region24: #{tpu_custom_call.1} parent=1 // pred_region
      %1942 = vsyncadd [#allocation4], 0
      %s1944 = sshll.u32 [#allocation6], 4
      %s1945 = int_to_ptr.vmem [resolvable:$true] %s1944
      %s1946 = sshll.u32 %s4, 4
      %s1947 = int_to_ptr.hbm [resolvable:$true] %s1946
      %1949 = dma.vmem_to_hbm [thread:$0]  %s1945, 128, %s1947, [#allocation4]
    $region25: #{tpu_custom_call.1} parent=1 // pred_fallthru
      _
    // Predicated region
    $region26: #{tpu_custom_call.1} parent=1 // pred_check
      _
    $region27: #{tpu_custom_call.1} parent=1 // pred_check_branch
      %1951 = sbr.rel (0) target = $region29
    $region28: #{tpu_custom_call.1} parent=1 // pred_region
      %1953 = dma.done [#allocation4], 128
    $region29: #{tpu_custom_call.1} parent=1 // pred_fallthru
      _
    %1954 = vsyncpa [#allocation4], 1
    %1955 = vsyncpa [#allocation5], 1

</llo_original>
